<compile_context>
chip_gen: v7x
topology: tpu7x:2x2x1
jax: 0.10.0
libtpu: 0.0.40
codegen_flags: <defaults>
</compile_context>

<pallas_src>
import functools

import jax
import jax.numpy as jnp
from jax import lax
from jax.experimental import pallas as pl
from jax.experimental.pallas import tpu as pltpu


# Safe scoped-VMEM request on every generation (v5e/v6e: 128 MiB phys, v7x: 64 MiB phys).
VMEM_LIMIT_BYTES = 48 * 1024 * 1024


# ---------------------------------------------------------------------------
# Tiling helpers
# ---------------------------------------------------------------------------

def _pick_tile(dim, preferred, align):
    """Largest tile <= `preferred` that divides `dim` and is a multiple of `align`.
    Falls back to the full dim (always a legal BlockSpec block size)."""
    if dim <= preferred:
        return dim
    t = (preferred // align) * align
    while t >= align:
        if dim % t == 0:
            return t
        t -= align
    return dim


def _pick_group(num_heads, dim_head, target_lanes=128):
    """Largest divisor G of num_heads with G * dim_head <= target_lanes (>= 1)."""
    gmax = max(1, target_lanes // max(1, dim_head))
    g = 1
    for cand in range(1, min(num_heads, gmax) + 1):
        if num_heads % cand == 0:
            g = cand
    return g


# ---------------------------------------------------------------------------
# 1) QKV projection: (M, C) @ (C, 3C) + b, written head-group-major as (3*NG, M, G*D)
# ---------------------------------------------------------------------------

def _qkv_proj_kernel(x_ref, w_ref, b_ref, o_ref, acc_ref):
    @pl.when(pl.program_id(2) == 0)
    def _():
        acc_ref[...] = jnp.zeros(acc_ref.shape, acc_ref.dtype)

    acc_ref[...] += jnp.dot(x_ref[...], w_ref[0],
                            preferred_element_type=jnp.float32)

    @pl.when(pl.program_id(2) == pl.num_programs(2) - 1)
    def _():
        o_ref[0] = (acc_ref[...] + b_ref[0]).astype(o_ref.dtype)


def qkv_projection(x2d, w_g, b_g):
    """x2d: (M, C); w_g: (3*NG, C, G*D); b_g: (3*NG, 1, G*D) -> (3*NG, M, G*D)."""
    M, C = x2d.shape
    GQ, _, GD = w_g.shape  # GQ = 3 * NG
    tm = _pick_tile(M, 256, 8)
    tk = _pick_tile(C, 512, 128)
    return pl.pallas_call(
        _qkv_proj_kernel,
        out_shape=jax.ShapeDtypeStruct((GQ, M, GD), x2d.dtype),
        grid_spec=pltpu.PrefetchScalarGridSpec(
            num_scalar_prefetch=0,
            grid=(GQ, M // tm, C // tk),
            in_specs=[
                pl.BlockSpec((tm, tk), lambda c, i, k: (i, k)),
                pl.BlockSpec((1, tk, GD), lambda c, i, k: (c, k, 0)),
                pl.BlockSpec((1, 1, GD), lambda c, i, k: (c, 0, 0)),
            ],
            out_specs=pl.BlockSpec((1, tm, GD), lambda c, i, k: (c, i, 0)),
            scratch_shapes=[pltpu.VMEM((tm, GD), jnp.float32)],
        ),
        compiler_params=pltpu.CompilerParams(
            dimension_semantics=("parallel", "parallel", "arbitrary"),
            vmem_limit_bytes=VMEM_LIMIT_BYTES),
    )(x2d, w_g, b_g)


# ---------------------------------------------------------------------------
# 2) Flash-style attention with online softmax, G heads per grid step
# ---------------------------------------------------------------------------

def _flash_attn_kernel(q_ref, k_ref, v_ref, o_ref, m_sc, l_sc, acc_sc, *, G, D):
    ki = pl.program_id(3)

    @pl.when(ki == 0)
    def _():
        m_sc[...] = jnp.full(m_sc.shape, -jnp.inf, m_sc.dtype)
        l_sc[...] = jnp.zeros(l_sc.shape, l_sc.dtype)
        acc_sc[...] = jnp.zeros(acc_sc.shape, acc_sc.dtype)

    # Scale is already folded into the Q weights/bias: no per-tile multiply here.
    q = q_ref[0]  # (tq, G*D)
    k = k_ref[0]  # (tk, G*D)
    v = v_ref[0]  # (tk, G*D)

    for g in range(G):  # static unroll over the heads packed into this group
        lo, hi = g * D, (g + 1) * D
        q_g = q[:, lo:hi]
        k_g = k[:, lo:hi]
        v_g = v[:, lo:hi]

        # q_g @ k_g^T without materializing a transposed copy of k.
        s = lax.dot_general(q_g, k_g, (((1,), (1,)), ((), ())),
                            preferred_element_type=jnp.float32)     # (tq, tk) f32

        m_prev = m_sc[g]
        m_new = jnp.maximum(m_prev, jnp.max(s, axis=-1, keepdims=True))
        alpha = jnp.exp(m_prev - m_new)
        p = jnp.exp(s - m_new)
        l_sc[g] = alpha * l_sc[g] + jnp.sum(p, axis=-1, keepdims=True)
        acc_sc[g] = alpha * acc_sc[g] + jnp.dot(
            p.astype(v_g.dtype), v_g, preferred_element_type=jnp.float32)
        m_sc[g] = m_new

    @pl.when(ki == pl.num_programs(3) - 1)
    def _():
        for g in range(G):
            inv_l = 1.0 / l_sc[g]        # exact, once per q tile, off the MXU path
            o_ref[0, :, g * D:(g + 1) * D] = (acc_sc[g] * inv_l).astype(o_ref.dtype)


def flash_attention(qkv_g, B, N, NG, G, D, *, tq_pref=512, tk_pref=512):
    """qkv_g: (3*NG, B*N, G*D) head-group-major Q|K|V -> (NG, B*N, G*D)."""
    M = B * N
    GD = G * D
    tq = _pick_tile(N, tq_pref, 8)
    tk = _pick_tile(N, tk_pref, 8)
    nq = N // tq
    nk = N // tk
    kernel = functools.partial(_flash_attn_kernel, G=G, D=D)
    return pl.pallas_call(
        kernel,
        out_shape=jax.ShapeDtypeStruct((NG, M, GD), qkv_g.dtype),
        grid_spec=pltpu.PrefetchScalarGridSpec(
            num_scalar_prefetch=0,
            grid=(B, NG, nq, nk),
            in_specs=[
                # the same (3*NG, M, GD) array is passed three times; index maps pick the
                # Q / K / V component and the per-(batch, head-group) row window.
                pl.BlockSpec((1, tq, GD), lambda b, h, qi, ki: (h, b * nq + qi, 0)),
                pl.BlockSpec((1, tk, GD), lambda b, h, qi, ki: (NG + h, b * nk + ki, 0)),
                pl.BlockSpec((1, tk, GD), lambda b, h, qi, ki: (2 * NG + h, b * nk + ki, 0)),
            ],
            out_specs=pl.BlockSpec((1, tq, GD), lambda b, h, qi, ki: (h, b * nq + qi, 0)),
            scratch_shapes=[
                pltpu.VMEM((G, tq, 1), jnp.float32),   # running max m (per head)
                pltpu.VMEM((G, tq, 1), jnp.float32),   # running denom l (per head)
                pltpu.VMEM((G, tq, D), jnp.float32),   # running numerator acc (per head)
            ],
        ),
        compiler_params=pltpu.CompilerParams(
            dimension_semantics=("parallel", "parallel", "parallel", "arbitrary"),
            vmem_limit_bytes=VMEM_LIMIT_BYTES),
    )(qkv_g, qkv_g, qkv_g)


# ---------------------------------------------------------------------------
# 3) Output projection: reduce over head groups; contraction dim G*D per step
# ---------------------------------------------------------------------------

def _proj_kernel(o_ref, w_ref, b_ref, y_ref, acc_ref):
    h = pl.program_id(2)

    @pl.when(h == 0)
    def _():
        acc_ref[...] = jnp.zeros(acc_ref.shape, acc_ref.dtype)

    acc_ref[...] += jnp.dot(o_ref[0], w_ref[0],
                            preferred_element_type=jnp.float32)

    @pl.when(h == pl.num_programs(2) - 1)
    def _():
        y_ref[...] = (acc_ref[...] + b_ref[...]).astype(y_ref.dtype)


def output_projection(o_g, w_g, b2, out_dtype):
    """o_g: (NG, M, G*D); w_g: (NG, G*D, C); b2: (1, C) -> (M, C)."""
    NG, M, GD = o_g.shape
    C = w_g.shape[2]
    tm = _pick_tile(M, 256, 8)
    tn = _pick_tile(C, 256, 128)
    return pl.pallas_call(
        _proj_kernel,
        out_shape=jax.ShapeDtypeStruct((M, C), out_dtype),
        grid_spec=pltpu.PrefetchScalarGridSpec(
            num_scalar_prefetch=0,
            grid=(M // tm, C // tn, NG),
            in_specs=[
                pl.BlockSpec((1, tm, GD), lambda i, j, h: (h, i, 0)),
                pl.BlockSpec((1, GD, tn), lambda i, j, h: (h, 0, j)),
                pl.BlockSpec((1, tn), lambda i, j, h: (0, j)),
            ],
            out_specs=pl.BlockSpec((tm, tn), lambda i, j, h: (i, j)),
            scratch_shapes=[pltpu.VMEM((tm, tn), jnp.float32)],
        ),
        compiler_params=pltpu.CompilerParams(
            dimension_semantics=("parallel", "parallel", "arbitrary"),
            vmem_limit_bytes=VMEM_LIMIT_BYTES),
    )(o_g, w_g, b2)


# ---------------------------------------------------------------------------
# Parameter setup (hoisted out of the jitted hot path, runs once)
# ---------------------------------------------------------------------------

def init_attention_params(key, dim):
    """Deterministic parameter init; matrices stored as (in, out) (== torch W.T)."""
    k1, k2, k3, k4 = jax.random.split(key, 4)
    s = 1.0 / jnp.sqrt(dim)
    return {
        "w_qkv": jax.random.uniform(k1, (dim, 3 * dim), jnp.float32, -s, s),
        "b_qkv": jax.random.uniform(k2, (3 * dim,), jnp.float32, -s, s),
        "w_proj": jax.random.uniform(k3, (dim, dim), jnp.float32, -s, s),
        "b_proj": jax.random.uniform(k4, (dim,), jnp.float32, -s, s),
    }


def prepare_attention_params(params, num_heads, group, compute_dtype=jnp.bfloat16):
    """One-time parameter re-layout: head grouping + softmax-scale folding + bf16 cast.

    Layouts produced (NG = H // G):
      w_qkv_g : (3*NG, C, G*D)  bf16, Q slice pre-scaled by D**-0.5
      b_qkv_g : (3*NG, 1, G*D)  f32,  Q slice pre-scaled
      w_proj_g: (NG, G*D, C)    bf16
      b_proj  : (1, C)          f32
    """
    C = params["w_qkv"].shape[0]
    H = num_heads
    D = C // H
    G = group
    NG = H // G
    scale = float(D) ** -0.5

    # torch Linear output columns of to_qkv are ordered (3, H, D).
    w = params["w_qkv"].reshape(C, 3, H, D)
    b = params["b_qkv"].reshape(3, H, D)
    # Fold the softmax scale into the Q projection (parameter-only).
    w = w.at[:, 0].multiply(scale)
    b = b.at[0].multiply(scale)

    w_g = (w.reshape(C, 3, NG, G * D)
             .transpose(1, 2, 0, 3)
             .reshape(3 * NG, C, G * D))
    b_g = b.reshape(3 * NG, 1, G * D)

    w_p = params["w_proj"].reshape(NG, G * D, C)
    b_p = params["b_proj"].reshape(1, C)

    return {
        "w_qkv_g": w_g.astype(compute_dtype),
        "b_qkv_g": b_g.astype(jnp.float32),
        "w_proj_g": w_p.astype(compute_dtype),
        "b_proj": b_p.astype(jnp.float32),
    }


# ---------------------------------------------------------------------------
# Module forward
# ---------------------------------------------------------------------------

def attention_forward(x, prep, num_heads, group):
    B, N, C = x.shape
    H = num_heads
    G = group
    NG = H // G
    D = C // H
    compute_dtype = prep["w_qkv_g"].dtype

    x2d = x.reshape(B * N, C).astype(compute_dtype)                   # free reshape + cast
    qkv_g = qkv_projection(x2d, prep["w_qkv_g"], prep["b_qkv_g"])      # (3*NG, B*N, G*D)
    o_g = flash_attention(qkv_g, B, N, NG, G, D)                       # (NG, B*N, G*D)
    y = output_projection(o_g, prep["w_proj_g"], prep["b_proj"],
                          out_dtype=x.dtype)                           # (B*N, C)
    # attn_dropout / ff_dropout with p=0.0 are identity.
    return y.reshape(B, N, C)


attention_forward_jit = jax.jit(attention_forward, static_argnums=(2, 3))


# Plain-JAX (f32) reference for correctness checking
def attention_forward_ref(x, params, num_heads):
    B, N, C = x.shape
    D = C // num_heads
    scale = float(D) ** -0.5
    qkv = x @ params["w_qkv"] + params["b_qkv"]
    qkv = qkv.reshape(B, N, 3, num_heads, D).transpose(2, 0, 3, 1, 4)
    q, k, v = qkv[0], qkv[1], qkv[2]
    attn = jnp.einsum("bhnd,bhmd->bhnm", q, k) * scale
    attn = jax.nn.softmax(attn, axis=-1)
    o = jnp.einsum("bhnm,bhmd->bhnd", attn, v)
    o = o.transpose(0, 2, 1, 3).reshape(B, N, C)
    return o @ params["w_proj"] + params["b_proj"]


if __name__ == "__main__":
    B, N, C, H = 2, 8, 32, 4   # dim_head = 8

    key = jax.random.PRNGKey(0)
    kx, kp = jax.random.split(key)
    x = jax.random.normal(kx, (B, N, C), jnp.float32)
    params = init_attention_params(kp, C)

    D = C // H
    G = _pick_group(H, D)                       # 4 heads/group -> lane width 32 (= C) here
    prep = prepare_attention_params(params, H, G)

    out = attention_forward_jit(x, prep, H, G)
    out = jax.block_until_ready(out)

    ref = attention_forward_ref(x, params, H)
    assert out.shape == (B, N, C)
    # Tolerance accounts for bf16 intermediates / bf16 MXU operands (f32 accumulation).
    assert jnp.allclose(out, ref, atol=5e-2, rtol=5e-2), "mismatch vs reference"

    print("KERNEL_OK")
</pallas_src>

<mosaic_0001>
module attributes {stable_mosaic.version = 11 : i64} {
  func.func @_proj_kernel(%arg0: i32, %arg1: i32, %arg2: i32, %arg3: memref<1x16x32xbf16, #tpu.memory_space<vmem>>, %arg4: memref<1x32x32xbf16, #tpu.memory_space<vmem>>, %arg5: memref<1x32xf32, #tpu.memory_space<vmem>>, %arg6: memref<16x32xf32, #tpu.memory_space<vmem>>, %arg7: memref<16x32xf32, #tpu.memory_space<vmem>>) attributes {dimension_semantics = [#tpu.dimension_semantics<parallel>, #tpu.dimension_semantics<parallel>, #tpu.dimension_semantics<arbitrary>], iteration_bounds = array<i64: 1, 1, 1>, scalar_prefetch = 0 : i64, scratch_operands = 1 : i64, tpu.core_type = #tpu.core_type<tc>, window_params = [{transform_indices = @transform_0, window_bounds = array<i64: 1, 16, 32>}, {transform_indices = @transform_1, window_bounds = array<i64: 1, 32, 32>}, {transform_indices = @transform_2, window_bounds = array<i64: 1, 32>}, {transform_indices = @transform_3, window_bounds = array<i64: 16, 32>}]} {
    %c0_i32 = arith.constant 0 : i32
    %0 = arith.cmpi eq, %arg2, %c0_i32 : i32
    %1 = arith.extui %0 : i1 to i32
    %c0_i32_0 = arith.constant 0 : i32
    %2 = arith.cmpi ne, %1, %c0_i32_0 : i32
    scf.if %2 {
      %cst_12 = arith.constant 0.000000e+00 : f32
      %14 = vector.broadcast %cst_12 : f32 to vector<16x32xf32>
      %c0_13 = arith.constant 0 : index
      %c0_14 = arith.constant 0 : index
      %15 = vector.load %arg7[%c0_13, %c0_14] : memref<16x32xf32, #tpu.memory_space<vmem>>, vector<16x32xf32>
      tpu.vector_store %arg7[%c0_13, %c0_14], %14 {strides = array<i32>} : memref<16x32xf32, #tpu.memory_space<vmem>>, vector<16x32xf32>,
    } else {
    }
    %c0 = arith.constant 0 : index
    %c0_1 = arith.constant 0 : index
    %3 = vector.load %arg7[%c0, %c0_1] : memref<16x32xf32, #tpu.memory_space<vmem>>, vector<16x32xf32>
    %c0_2 = arith.constant 0 : index
    %c0_3 = arith.constant 0 : index
    %c0_4 = arith.constant 0 : index
    %4 = vector.load %arg3[%c0_2, %c0_3, %c0_4] : memref<1x16x32xbf16, #tpu.memory_space<vmem>>, vector<1x16x32xbf16>
    %5 = vector.shape_cast %4 : vector<1x16x32xbf16> to vector<16x32xbf16>
    %c0_5 = arith.constant 0 : index
    %c0_6 = arith.constant 0 : index
    %c0_7 = arith.constant 0 : index
    %6 = vector.load %arg4[%c0_5, %c0_6, %c0_7] : memref<1x32x32xbf16, #tpu.memory_space<vmem>>, vector<1x32x32xbf16>
    %7 = vector.shape_cast %6 : vector<1x32x32xbf16> to vector<32x32xbf16>
    %cst = arith.constant dense<0.000000e+00> : vector<16x32xf32>
    %8 = tpu.matmul %5, %7, %cst {dimension_numbers = #tpu.dot_dimension_numbers<[1], [0], [0], [1], [0, 0, 1, 1], [], []>} : vector<16x32xbf16>, vector<32x32xbf16>, vector<16x32xf32> -> vector<16x32xf32>
    %9 = arith.addf %3, %8 : vector<16x32xf32>
    %c0_8 = arith.constant 0 : index
    %c0_9 = arith.constant 0 : index
    %10 = vector.load %arg7[%c0_8, %c0_9] : memref<16x32xf32, #tpu.memory_space<vmem>>, vector<16x32xf32>
    tpu.vector_store %arg7[%c0_8, %c0_9], %9 {strides = array<i32>} : memref<16x32xf32, #tpu.memory_space<vmem>>, vector<16x32xf32>,
    %c0_i32_10 = arith.constant 0 : i32
    %11 = arith.cmpi eq, %arg2, %c0_i32_10 : i32
    %12 = arith.extui %11 : i1 to i32
    %c0_i32_11 = arith.constant 0 : i32
    %13 = arith.cmpi ne, %12, %c0_i32_11 : i32
    scf.if %13 {
      %c0_12 = arith.constant 0 : index
      %c0_13 = arith.constant 0 : index
      %14 = vector.load %arg7[%c0_12, %c0_13] : memref<16x32xf32, #tpu.memory_space<vmem>>, vector<16x32xf32>
      %c0_14 = arith.constant 0 : index
      %c0_15 = arith.constant 0 : index
      %15 = vector.load %arg5[%c0_14, %c0_15] : memref<1x32xf32, #tpu.memory_space<vmem>>, vector<1x32xf32>
      %16 = vector.broadcast %15 : vector<1x32xf32> to vector<16x32xf32>
      %17 = arith.addf %14, %16 : vector<16x32xf32>
      %c0_16 = arith.constant 0 : index
      %c0_17 = arith.constant 0 : index
      %18 = vector.load %arg6[%c0_16, %c0_17] : memref<16x32xf32, #tpu.memory_space<vmem>>, vector<16x32xf32>
      tpu.vector_store %arg6[%c0_16, %c0_17], %17 {strides = array<i32>} : memref<16x32xf32, #tpu.memory_space<vmem>>, vector<16x32xf32>,
    } else {
    }
    return
  }
  func.func @transform_0(%arg0: i32, %arg1: i32, %arg2: i32) -> (i32, i32, i32) {
    %c0_i32 = arith.constant 0 : i32
    %c0_i32_0 = arith.constant 0 : i32
    return %arg2, %arg0, %c0_i32 : i32, i32, i32
  }
  func.func @transform_1(%arg0: i32, %arg1: i32, %arg2: i32) -> (i32, i32, i32) {
    %c0_i32 = arith.constant 0 : i32
    %c0_i32_0 = arith.constant 0 : i32
    return %arg2, %c0_i32, %arg1 : i32, i32, i32
  }
  func.func @transform_2(%arg0: i32, %arg1: i32, %arg2: i32) -> (i32, i32) {
    %c0_i32 = arith.constant 0 : i32
    %c0_i32_0 = arith.constant 0 : i32
    return %c0_i32, %arg1 : i32, i32
  }
  func.func @transform_3(%arg0: i32, %arg1: i32, %arg2: i32) -> (i32, i32) {
    %c0_i32 = arith.constant 0 : i32
    return %arg0, %arg1 : i32, i32
  }
}

module attributes {stable_mosaic.version = 11 : i64} {
  func.func @_qkv_proj_kernel(%arg0: i32, %arg1: i32, %arg2: i32, %arg3: memref<16x32xbf16, #tpu.memory_space<vmem>>, %arg4: memref<1x32x32xbf16, #tpu.memory_space<vmem>>, %arg5: memref<1x1x32xf32, #tpu.memory_space<vmem>>, %arg6: memref<1x16x32xbf16, #tpu.memory_space<vmem>>, %arg7: memref<16x32xf32, #tpu.memory_space<vmem>>) attributes {dimension_semantics = [#tpu.dimension_semantics<parallel>, #tpu.dimension_semantics<parallel>, #tpu.dimension_semantics<arbitrary>], iteration_bounds = array<i64: 3, 1, 1>, scalar_prefetch = 0 : i64, scratch_operands = 1 : i64, tpu.core_type = #tpu.core_type<tc>, window_params = [{transform_indices = @transform_0, window_bounds = array<i64: 16, 32>}, {transform_indices = @transform_1, window_bounds = array<i64: 1, 32, 32>}, {transform_indices = @transform_2, window_bounds = array<i64: 1, 1, 32>}, {transform_indices = @transform_3, window_bounds = array<i64: 1, 16, 32>}]} {
    %c0_i32 = arith.constant 0 : i32
    %0 = arith.cmpi eq, %arg2, %c0_i32 : i32
    %1 = arith.extui %0 : i1 to i32
    %c0_i32_0 = arith.constant 0 : i32
    %2 = arith.cmpi ne, %1, %c0_i32_0 : i32
    scf.if %2 {
      %cst_11 = arith.constant 0.000000e+00 : f32
      %13 = vector.broadcast %cst_11 : f32 to vector<16x32xf32>
      %c0_12 = arith.constant 0 : index
      %c0_13 = arith.constant 0 : index
      %14 = vector.load %arg7[%c0_12, %c0_13] : memref<16x32xf32, #tpu.memory_space<vmem>>, vector<16x32xf32>
      tpu.vector_store %arg7[%c0_12, %c0_13], %13 {strides = array<i32>} : memref<16x32xf32, #tpu.memory_space<vmem>>, vector<16x32xf32>,
    } else {
    }
    %c0 = arith.constant 0 : index
    %c0_1 = arith.constant 0 : index
    %3 = vector.load %arg7[%c0, %c0_1] : memref<16x32xf32, #tpu.memory_space<vmem>>, vector<16x32xf32>
    %c0_2 = arith.constant 0 : index
    %c0_3 = arith.constant 0 : index
    %4 = vector.load %arg3[%c0_2, %c0_3] : memref<16x32xbf16, #tpu.memory_space<vmem>>, vector<16x32xbf16>
    %c0_4 = arith.constant 0 : index
    %c0_5 = arith.constant 0 : index
    %c0_6 = arith.constant 0 : index
    %5 = vector.load %arg4[%c0_4, %c0_5, %c0_6] : memref<1x32x32xbf16, #tpu.memory_space<vmem>>, vector<1x32x32xbf16>
    %6 = vector.shape_cast %5 : vector<1x32x32xbf16> to vector<32x32xbf16>
    %cst = arith.constant dense<0.000000e+00> : vector<16x32xf32>
    %7 = tpu.matmul %4, %6, %cst {dimension_numbers = #tpu.dot_dimension_numbers<[1], [0], [0], [1], [0, 0, 1, 1], [], []>} : vector<16x32xbf16>, vector<32x32xbf16>, vector<16x32xf32> -> vector<16x32xf32>
    %8 = arith.addf %3, %7 : vector<16x32xf32>
    %c0_7 = arith.constant 0 : index
    %c0_8 = arith.constant 0 : index
    %9 = vector.load %arg7[%c0_7, %c0_8] : memref<16x32xf32, #tpu.memory_space<vmem>>, vector<16x32xf32>
    tpu.vector_store %arg7[%c0_7, %c0_8], %8 {strides = array<i32>} : memref<16x32xf32, #tpu.memory_space<vmem>>, vector<16x32xf32>,
    %c0_i32_9 = arith.constant 0 : i32
    %10 = arith.cmpi eq, %arg2, %c0_i32_9 : i32
    %11 = arith.extui %10 : i1 to i32
    %c0_i32_10 = arith.constant 0 : i32
    %12 = arith.cmpi ne, %11, %c0_i32_10 : i32
    scf.if %12 {
      %c0_11 = arith.constant 0 : index
      %c0_12 = arith.constant 0 : index
      %13 = vector.load %arg7[%c0_11, %c0_12] : memref<16x32xf32, #tpu.memory_space<vmem>>, vector<16x32xf32>
      %c0_13 = arith.constant 0 : index
      %c0_14 = arith.constant 0 : index
      %c0_15 = arith.constant 0 : index
      %14 = vector.load %arg5[%c0_13, %c0_14, %c0_15] : memref<1x1x32xf32, #tpu.memory_space<vmem>>, vector<1x1x32xf32>
      %15 = vector.shape_cast %14 : vector<1x1x32xf32> to vector<1x32xf32>
      %16 = vector.broadcast %15 : vector<1x32xf32> to vector<16x32xf32>
      %17 = arith.addf %13, %16 : vector<16x32xf32>
      %18 = arith.truncf %17 : vector<16x32xf32> to vector<16x32xbf16>
      %c0_16 = arith.constant 0 : index
      %c0_17 = arith.constant 0 : index
      %c0_18 = arith.constant 0 : index
      %19 = vector.load %arg6[%c0_16, %c0_17, %c0_18] : memref<1x16x32xbf16, #tpu.memory_space<vmem>>, vector<1x16x32xbf16>
      %20 = vector.shape_cast %19 : vector<1x16x32xbf16> to vector<16x32xbf16>
      %21 = vector.shape_cast %18 : vector<16x32xbf16> to vector<1x16x32xbf16>
      tpu.vector_store %arg6[%c0_16, %c0_17, %c0_18], %21 {strides = array<i32>} : memref<1x16x32xbf16, #tpu.memory_space<vmem>>, vector<1x16x32xbf16>,
    } else {
    }
    return
  }
  func.func @transform_0(%arg0: i32, %arg1: i32, %arg2: i32) -> (i32, i32) {
    %c0_i32 = arith.constant 0 : i32
    return %arg1, %arg2 : i32, i32
  }
  func.func @transform_1(%arg0: i32, %arg1: i32, %arg2: i32) -> (i32, i32, i32) {
    %c0_i32 = arith.constant 0 : i32
    %c0_i32_0 = arith.constant 0 : i32
    return %arg0, %arg2, %c0_i32 : i32, i32, i32
  }
  func.func @transform_2(%arg0: i32, %arg1: i32, %arg2: i32) -> (i32, i32, i32) {
    %c0_i32 = arith.constant 0 : i32
    %c0_i32_0 = arith.constant 0 : i32
    %c0_i32_1 = arith.constant 0 : i32
    return %arg0, %c0_i32, %c0_i32_0 : i32, i32, i32
  }
  func.func @transform_3(%arg0: i32, %arg1: i32, %arg2: i32) -> (i32, i32, i32) {
    %c0_i32 = arith.constant 0 : i32
    %c0_i32_0 = arith.constant 0 : i32
    return %arg0, %arg1, %c0_i32 : i32, i32, i32
  }
}

module attributes {stable_mosaic.version = 11 : i64} {
  func.func @_flash_attn_kernel(%arg0: i32, %arg1: i32, %arg2: i32, %arg3: i32, %arg4: memref<1x8x32xbf16, #tpu.memory_space<vmem>>, %arg5: memref<1x8x32xbf16, #tpu.memory_space<vmem>>, %arg6: memref<1x8x32xbf16, #tpu.memory_space<vmem>>, %arg7: memref<1x8x32xbf16, #tpu.memory_space<vmem>>, %arg8: memref<4x8x1xf32, #tpu.memory_space<vmem>>, %arg9: memref<4x8x1xf32, #tpu.memory_space<vmem>>, %arg10: memref<4x8x8xf32, #tpu.memory_space<vmem>>) attributes {dimension_semantics = [#tpu.dimension_semantics<parallel>, #tpu.dimension_semantics<parallel>, #tpu.dimension_semantics<parallel>, #tpu.dimension_semantics<arbitrary>], iteration_bounds = array<i64: 2, 1, 1, 1>, scalar_prefetch = 0 : i64, scratch_operands = 3 : i64, tpu.core_type = #tpu.core_type<tc>, window_params = [{transform_indices = @transform_0, window_bounds = array<i64: 1, 8, 32>}, {transform_indices = @transform_1, window_bounds = array<i64: 1, 8, 32>}, {transform_indices = @transform_2, window_bounds = array<i64: 1, 8, 32>}, {transform_indices = @transform_3, window_bounds = array<i64: 1, 8, 32>}]} {
    %c0_i32 = arith.constant 0 : i32
    %0 = arith.cmpi eq, %arg3, %c0_i32 : i32
    %1 = arith.extui %0 : i1 to i32
    %c0_i32_0 = arith.constant 0 : i32
    %2 = arith.cmpi ne, %1, %c0_i32_0 : i32
    scf.if %2 {
      %cst_95 = arith.constant 0xFF800000 : f32
      %156 = vector.broadcast %cst_95 : f32 to vector<4x8x1xf32>
      %c0_96 = arith.constant 0 : index
      %c0_97 = arith.constant 0 : index
      %c0_98 = arith.constant 0 : index
      %157 = vector.load %arg8[%c0_96, %c0_97, %c0_98] : memref<4x8x1xf32, #tpu.memory_space<vmem>>, vector<4x8x1xf32>
      tpu.vector_store %arg8[%c0_96, %c0_97, %c0_98], %156 {strides = array<i32>} : memref<4x8x1xf32, #tpu.memory_space<vmem>>, vector<4x8x1xf32>,
      %cst_99 = arith.constant 0.000000e+00 : f32
      %158 = vector.broadcast %cst_99 : f32 to vector<4x8x1xf32>
      %c0_100 = arith.constant 0 : index
      %c0_101 = arith.constant 0 : index
      %c0_102 = arith.constant 0 : index
      %159 = vector.load %arg9[%c0_100, %c0_101, %c0_102] : memref<4x8x1xf32, #tpu.memory_space<vmem>>, vector<4x8x1xf32>
      tpu.vector_store %arg9[%c0_100, %c0_101, %c0_102], %158 {strides = array<i32>} : memref<4x8x1xf32, #tpu.memory_space<vmem>>, vector<4x8x1xf32>,
      %cst_103 = arith.constant 0.000000e+00 : f32
      %160 = vector.broadcast %cst_103 : f32 to vector<4x8x8xf32>
      %c0_104 = arith.constant 0 : index
      %c0_105 = arith.constant 0 : index
      %c0_106 = arith.constant 0 : index
      %161 = vector.load %arg10[%c0_104, %c0_105, %c0_106] : memref<4x8x8xf32, #tpu.memory_space<vmem>>, vector<4x8x8xf32>
      tpu.vector_store %arg10[%c0_104, %c0_105, %c0_106], %160 {strides = array<i32>} : memref<4x8x8xf32, #tpu.memory_space<vmem>>, vector<4x8x8xf32>,
    } else {
    }
    %c0 = arith.constant 0 : index
    %c0_1 = arith.constant 0 : index
    %c0_2 = arith.constant 0 : index
    %3 = vector.load %arg4[%c0, %c0_1, %c0_2] : memref<1x8x32xbf16, #tpu.memory_space<vmem>>, vector<1x8x32xbf16>
    %4 = vector.shape_cast %3 : vector<1x8x32xbf16> to vector<8x32xbf16>
    %c0_3 = arith.constant 0 : index
    %c0_4 = arith.constant 0 : index
    %c0_5 = arith.constant 0 : index
    %5 = vector.load %arg5[%c0_3, %c0_4, %c0_5] : memref<1x8x32xbf16, #tpu.memory_space<vmem>>, vector<1x8x32xbf16>
    %6 = vector.shape_cast %5 : vector<1x8x32xbf16> to vector<8x32xbf16>
    %c0_6 = arith.constant 0 : index
    %c0_7 = arith.constant 0 : index
    %c0_8 = arith.constant 0 : index
    %7 = vector.load %arg6[%c0_6, %c0_7, %c0_8] : memref<1x8x32xbf16, #tpu.memory_space<vmem>>, vector<1x8x32xbf16>
    %8 = vector.shape_cast %7 : vector<1x8x32xbf16> to vector<8x32xbf16>
    %9 = vector.extract_strided_slice %4 {offsets = [0, 0], sizes = [8, 8], strides = [1, 1]} : vector<8x32xbf16> to vector<8x8xbf16>
    %10 = vector.extract_strided_slice %6 {offsets = [0, 0], sizes = [8, 8], strides = [1, 1]} : vector<8x32xbf16> to vector<8x8xbf16>
    %11 = vector.extract_strided_slice %8 {offsets = [0, 0], sizes = [8, 8], strides = [1, 1]} : vector<8x32xbf16> to vector<8x8xbf16>
    %cst = arith.constant dense<0.000000e+00> : vector<8x8xf32>
    %12 = tpu.matmul %9, %10, %cst {dimension_numbers = #tpu.dot_dimension_numbers<[1], [1], [0], [0], [0, 0, 1, 0], [], []>} : vector<8x8xbf16>, vector<8x8xbf16>, vector<8x8xf32> -> vector<8x8xf32>
    %c0_9 = arith.constant 0 : index
    %c0_10 = arith.constant 0 : index
    %c0_11 = arith.constant 0 : index
    %13 = vector.load %arg8[%c0_9, %c0_10, %c0_11] : memref<4x8x1xf32, #tpu.memory_space<vmem>>, vector<1x8x1xf32>
    %14 = vector.shape_cast %13 : vector<1x8x1xf32> to vector<8x1xf32>
    %cst_12 = arith.constant dense<0xFF800000> : vector<8xf32>
    %15 = vector.multi_reduction <maximumf>, %12, %cst_12 [1] : vector<8x8xf32> to vector<8xf32>
    %16 = vector.shape_cast %15 : vector<8xf32> to vector<8x1xf32>
    %17 = arith.maximumf %14, %16 : vector<8x1xf32>
    %18 = arith.subf %14, %17 : vector<8x1xf32>
    %19 = math.exp %18 : vector<8x1xf32>
    %20 = vector.broadcast %17 : vector<8x1xf32> to vector<8x8xf32>
    %21 = arith.subf %12, %20 : vector<8x8xf32>
    %22 = math.exp %21 : vector<8x8xf32>
    %c0_13 = arith.constant 0 : index
    %c0_14 = arith.constant 0 : index
    %c0_15 = arith.constant 0 : index
    %23 = vector.load %arg9[%c0_13, %c0_14, %c0_15] : memref<4x8x1xf32, #tpu.memory_space<vmem>>, vector<1x8x1xf32>
    %24 = vector.shape_cast %23 : vector<1x8x1xf32> to vector<8x1xf32>
    %25 = arith.mulf %19, %24 : vector<8x1xf32>
    %cst_16 = arith.constant dense<0.000000e+00> : vector<8xf32>
    %26 = vector.multi_reduction <add>, %22, %cst_16 [1] : vector<8x8xf32> to vector<8xf32>
    %27 = vector.shape_cast %26 : vector<8xf32> to vector<8x1xf32>
    %28 = arith.addf %25, %27 : vector<8x1xf32>
    %c0_17 = arith.constant 0 : index
    %c0_18 = arith.constant 0 : index
    %c0_19 = arith.constant 0 : index
    %29 = vector.load %arg9[%c0_17, %c0_18, %c0_19] : memref<4x8x1xf32, #tpu.memory_space<vmem>>, vector<1x8x1xf32>
    %30 = vector.shape_cast %29 : vector<1x8x1xf32> to vector<8x1xf32>
    %31 = vector.shape_cast %28 : vector<8x1xf32> to vector<1x8x1xf32>
    tpu.vector_store %arg9[%c0_17, %c0_18, %c0_19], %31 {strides = array<i32>} : memref<4x8x1xf32, #tpu.memory_space<vmem>>, vector<1x8x1xf32>,
    %c0_20 = arith.constant 0 : index
    %c0_21 = arith.constant 0 : index
    %c0_22 = arith.constant 0 : index
    %32 = vector.load %arg10[%c0_20, %c0_21, %c0_22] : memref<4x8x8xf32, #tpu.memory_space<vmem>>, vector<1x8x8xf32>
    %33 = vector.shape_cast %32 : vector<1x8x8xf32> to vector<8x8xf32>
    %34 = vector.broadcast %19 : vector<8x1xf32> to vector<8x8xf32>
    %35 = arith.mulf %34, %33 : vector<8x8xf32>
    %36 = arith.truncf %22 : vector<8x8xf32> to vector<8x8xbf16>
    %cst_23 = arith.constant dense<0.000000e+00> : vector<8x8xf32>
    %37 = tpu.matmul %36, %11, %cst_23 {dimension_numbers = #tpu.dot_dimension_numbers<[1], [0], [0], [1], [0, 0, 1, 1], [], []>} : vector<8x8xbf16>, vector<8x8xbf16>, vector<8x8xf32> -> vector<8x8xf32>
    %38 = arith.addf %35, %37 : vector<8x8xf32>
    %c0_24 = arith.constant 0 : index
    %c0_25 = arith.constant 0 : index
    %c0_26 = arith.constant 0 : index
    %39 = vector.load %arg10[%c0_24, %c0_25, %c0_26] : memref<4x8x8xf32, #tpu.memory_space<vmem>>, vector<1x8x8xf32>
    %40 = vector.shape_cast %39 : vector<1x8x8xf32> to vector<8x8xf32>
    %41 = vector.shape_cast %38 : vector<8x8xf32> to vector<1x8x8xf32>
    tpu.vector_store %arg10[%c0_24, %c0_25, %c0_26], %41 {strides = array<i32>} : memref<4x8x8xf32, #tpu.memory_space<vmem>>, vector<1x8x8xf32>,
    %c0_27 = arith.constant 0 : index
    %c0_28 = arith.constant 0 : index
    %c0_29 = arith.constant 0 : index
    %42 = vector.load %arg8[%c0_27, %c0_28, %c0_29] : memref<4x8x1xf32, #tpu.memory_space<vmem>>, vector<1x8x1xf32>
    %43 = vector.shape_cast %42 : vector<1x8x1xf32> to vector<8x1xf32>
    %44 = vector.shape_cast %17 : vector<8x1xf32> to vector<1x8x1xf32>
    tpu.vector_store %arg8[%c0_27, %c0_28, %c0_29], %44 {strides = array<i32>} : memref<4x8x1xf32, #tpu.memory_space<vmem>>, vector<1x8x1xf32>,
    %45 = vector.extract_strided_slice %4 {offsets = [0, 8], sizes = [8, 8], strides = [1, 1]} : vector<8x32xbf16> to vector<8x8xbf16>
    %46 = vector.extract_strided_slice %6 {offsets = [0, 8], sizes = [8, 8], strides = [1, 1]} : vector<8x32xbf16> to vector<8x8xbf16>
    %47 = vector.extract_strided_slice %8 {offsets = [0, 8], sizes = [8, 8], strides = [1, 1]} : vector<8x32xbf16> to vector<8x8xbf16>
    %cst_30 = arith.constant dense<0.000000e+00> : vector<8x8xf32>
    %48 = tpu.matmul %45, %46, %cst_30 {dimension_numbers = #tpu.dot_dimension_numbers<[1], [1], [0], [0], [0, 0, 1, 0], [], []>} : vector<8x8xbf16>, vector<8x8xbf16>, vector<8x8xf32> -> vector<8x8xf32>
    %c1 = arith.constant 1 : index
    %c0_31 = arith.constant 0 : index
    %c0_32 = arith.constant 0 : index
    %49 = vector.load %arg8[%c1, %c0_31, %c0_32] : memref<4x8x1xf32, #tpu.memory_space<vmem>>, vector<1x8x1xf32>
    %50 = vector.shape_cast %49 : vector<1x8x1xf32> to vector<8x1xf32>
    %cst_33 = arith.constant dense<0xFF800000> : vector<8xf32>
    %51 = vector.multi_reduction <maximumf>, %48, %cst_33 [1] : vector<8x8xf32> to vector<8xf32>
    %52 = vector.shape_cast %51 : vector<8xf32> to vector<8x1xf32>
    %53 = arith.maximumf %50, %52 : vector<8x1xf32>
    %54 = arith.subf %50, %53 : vector<8x1xf32>
    %55 = math.exp %54 : vector<8x1xf32>
    %56 = vector.broadcast %53 : vector<8x1xf32> to vector<8x8xf32>
    %57 = arith.subf %48, %56 : vector<8x8xf32>
    %58 = math.exp %57 : vector<8x8xf32>
    %c1_34 = arith.constant 1 : index
    %c0_35 = arith.constant 0 : index
    %c0_36 = arith.constant 0 : index
    %59 = vector.load %arg9[%c1_34, %c0_35, %c0_36] : memref<4x8x1xf32, #tpu.memory_space<vmem>>, vector<1x8x1xf32>
    %60 = vector.shape_cast %59 : vector<1x8x1xf32> to vector<8x1xf32>
    %61 = arith.mulf %55, %60 : vector<8x1xf32>
    %cst_37 = arith.constant dense<0.000000e+00> : vector<8xf32>
    %62 = vector.multi_reduction <add>, %58, %cst_37 [1] : vector<8x8xf32> to vector<8xf32>
    %63 = vector.shape_cast %62 : vector<8xf32> to vector<8x1xf32>
    %64 = arith.addf %61, %63 : vector<8x1xf32>
    %c1_38 = arith.constant 1 : index
    %c0_39 = arith.constant 0 : index
    %c0_40 = arith.constant 0 : index
    %65 = vector.load %arg9[%c1_38, %c0_39, %c0_40] : memref<4x8x1xf32, #tpu.memory_space<vmem>>, vector<1x8x1xf32>
    %66 = vector.shape_cast %65 : vector<1x8x1xf32> to vector<8x1xf32>
    %67 = vector.shape_cast %64 : vector<8x1xf32> to vector<1x8x1xf32>
    tpu.vector_store %arg9[%c1_38, %c0_39, %c0_40], %67 {strides = array<i32>} : memref<4x8x1xf32, #tpu.memory_space<vmem>>, vector<1x8x1xf32>,
    %c1_41 = arith.constant 1 : index
    %c0_42 = arith.constant 0 : index
    %c0_43 = arith.constant 0 : index
    %68 = vector.load %arg10[%c1_41, %c0_42, %c0_43] : memref<4x8x8xf32, #tpu.memory_space<vmem>>, vector<1x8x8xf32>
    %69 = vector.shape_cast %68 : vector<1x8x8xf32> to vector<8x8xf32>
    %70 = vector.broadcast %55 : vector<8x1xf32> to vector<8x8xf32>
    %71 = arith.mulf %70, %69 : vector<8x8xf32>
    %72 = arith.truncf %58 : vector<8x8xf32> to vector<8x8xbf16>
    %cst_44 = arith.constant dense<0.000000e+00> : vector<8x8xf32>
    %73 = tpu.matmul %72, %47, %cst_44 {dimension_numbers = #tpu.dot_dimension_numbers<[1], [0], [0], [1], [0, 0, 1, 1], [], []>} : vector<8x8xbf16>, vector<8x8xbf16>, vector<8x8xf32> -> vector<8x8xf32>
    %74 = arith.addf %71, %73 : vector<8x8xf32>
    %c1_45 = arith.constant 1 : index
    %c0_46 = arith.constant 0 : index
    %c0_47 = arith.constant 0 : index
    %75 = vector.load %arg10[%c1_45, %c0_46, %c0_47] : memref<4x8x8xf32, #tpu.memory_space<vmem>>, vector<1x8x8xf32>
    %76 = vector.shape_cast %75 : vector<1x8x8xf32> to vector<8x8xf32>
    %77 = vector.shape_cast %74 : vector<8x8xf32> to vector<1x8x8xf32>
    tpu.vector_store %arg10[%c1_45, %c0_46, %c0_47], %77 {strides = array<i32>} : memref<4x8x8xf32, #tpu.memory_space<vmem>>, vector<1x8x8xf32>,
    %c1_48 = arith.constant 1 : index
    %c0_49 = arith.constant 0 : index
    %c0_50 = arith.constant 0 : index
    %78 = vector.load %arg8[%c1_48, %c0_49, %c0_50] : memref<4x8x1xf32, #tpu.memory_space<vmem>>, vector<1x8x1xf32>
    %79 = vector.shape_cast %78 : vector<1x8x1xf32> to vector<8x1xf32>
    %80 = vector.shape_cast %53 : vector<8x1xf32> to vector<1x8x1xf32>
    tpu.vector_store %arg8[%c1_48, %c0_49, %c0_50], %80 {strides = array<i32>} : memref<4x8x1xf32, #tpu.memory_space<vmem>>, vector<1x8x1xf32>,
    %81 = vector.extract_strided_slice %4 {offsets = [0, 16], sizes = [8, 8], strides = [1, 1]} : vector<8x32xbf16> to vector<8x8xbf16>
    %82 = vector.extract_strided_slice %6 {offsets = [0, 16], sizes = [8, 8], strides = [1, 1]} : vector<8x32xbf16> to vector<8x8xbf16>
    %83 = vector.extract_strided_slice %8 {offsets = [0, 16], sizes = [8, 8], strides = [1, 1]} : vector<8x32xbf16> to vector<8x8xbf16>
    %cst_51 = arith.constant dense<0.000000e+00> : vector<8x8xf32>
    %84 = tpu.matmul %81, %82, %cst_51 {dimension_numbers = #tpu.dot_dimension_numbers<[1], [1], [0], [0], [0, 0, 1, 0], [], []>} : vector<8x8xbf16>, vector<8x8xbf16>, vector<8x8xf32> -> vector<8x8xf32>
    %c2 = arith.constant 2 : index
    %c0_52 = arith.constant 0 : index
    %c0_53 = arith.constant 0 : index
    %85 = vector.load %arg8[%c2, %c0_52, %c0_53] : memref<4x8x1xf32, #tpu.memory_space<vmem>>, vector<1x8x1xf32>
    %86 = vector.shape_cast %85 : vector<1x8x1xf32> to vector<8x1xf32>
    %cst_54 = arith.constant dense<0xFF800000> : vector<8xf32>
    %87 = vector.multi_reduction <maximumf>, %84, %cst_54 [1] : vector<8x8xf32> to vector<8xf32>
    %88 = vector.shape_cast %87 : vector<8xf32> to vector<8x1xf32>
    %89 = arith.maximumf %86, %88 : vector<8x1xf32>
    %90 = arith.subf %86, %89 : vector<8x1xf32>
    %91 = math.exp %90 : vector<8x1xf32>
    %92 = vector.broadcast %89 : vector<8x1xf32> to vector<8x8xf32>
    %93 = arith.subf %84, %92 : vector<8x8xf32>
    %94 = math.exp %93 : vector<8x8xf32>
    %c2_55 = arith.constant 2 : index
    %c0_56 = arith.constant 0 : index
    %c0_57 = arith.constant 0 : index
    %95 = vector.load %arg9[%c2_55, %c0_56, %c0_57] : memref<4x8x1xf32, #tpu.memory_space<vmem>>, vector<1x8x1xf32>
    %96 = vector.shape_cast %95 : vector<1x8x1xf32> to vector<8x1xf32>
    %97 = arith.mulf %91, %96 : vector<8x1xf32>
    %cst_58 = arith.constant dense<0.000000e+00> : vector<8xf32>
    %98 = vector.multi_reduction <add>, %94, %cst_58 [1] : vector<8x8xf32> to vector<8xf32>
    %99 = vector.shape_cast %98 : vector<8xf32> to vector<8x1xf32>
    %100 = arith.addf %97, %99 : vector<8x1xf32>
    %c2_59 = arith.constant 2 : index
    %c0_60 = arith.constant 0 : index
    %c0_61 = arith.constant 0 : index
    %101 = vector.load %arg9[%c2_59, %c0_60, %c0_61] : memref<4x8x1xf32, #tpu.memory_space<vmem>>, vector<1x8x1xf32>
    %102 = vector.shape_cast %101 : vector<1x8x1xf32> to vector<8x1xf32>
    %103 = vector.shape_cast %100 : vector<8x1xf32> to vector<1x8x1xf32>
    tpu.vector_store %arg9[%c2_59, %c0_60, %c0_61], %103 {strides = array<i32>} : memref<4x8x1xf32, #tpu.memory_space<vmem>>, vector<1x8x1xf32>,
    %c2_62 = arith.constant 2 : index
    %c0_63 = arith.constant 0 : index
    %c0_64 = arith.constant 0 : index
    %104 = vector.load %arg10[%c2_62, %c0_63, %c0_64] : memref<4x8x8xf32, #tpu.memory_space<vmem>>, vector<1x8x8xf32>
    %105 = vector.shape_cast %104 : vector<1x8x8xf32> to vector<8x8xf32>
    %106 = vector.broadcast %91 : vector<8x1xf32> to vector<8x8xf32>
    %107 = arith.mulf %106, %105 : vector<8x8xf32>
    %108 = arith.truncf %94 : vector<8x8xf32> to vector<8x8xbf16>
    %cst_65 = arith.constant dense<0.000000e+00> : vector<8x8xf32>
    %109 = tpu.matmul %108, %83, %cst_65 {dimension_numbers = #tpu.dot_dimension_numbers<[1], [0], [0], [1], [0, 0, 1, 1], [], []>} : vector<8x8xbf16>, vector<8x8xbf16>, vector<8x8xf32> -> vector<8x8xf32>
    %110 = arith.addf %107, %109 : vector<8x8xf32>
    %c2_66 = arith.constant 2 : index
    %c0_67 = arith.constant 0 : index
    %c0_68 = arith.constant 0 : index
    %111 = vector.load %arg10[%c2_66, %c0_67, %c0_68] : memref<4x8x8xf32, #tpu.memory_space<vmem>>, vector<1x8x8xf32>
    %112 = vector.shape_cast %111 : vector<1x8x8xf32> to vector<8x8xf32>
    %113 = vector.shape_cast %110 : vector<8x8xf32> to vector<1x8x8xf32>
    tpu.vector_store %arg10[%c2_66, %c0_67, %c0_68], %113 {strides = array<i32>} : memref<4x8x8xf32, #tpu.memory_space<vmem>>, vector<1x8x8xf32>,
    %c2_69 = arith.constant 2 : index
    %c0_70 = arith.constant 0 : index
    %c0_71 = arith.constant 0 : index
    %114 = vector.load %arg8[%c2_69, %c0_70, %c0_71] : memref<4x8x1xf32, #tpu.memory_space<vmem>>, vector<1x8x1xf32>
    %115 = vector.shape_cast %114 : vector<1x8x1xf32> to vector<8x1xf32>
    %116 = vector.shape_cast %89 : vector<8x1xf32> to vector<1x8x1xf32>
    tpu.vector_store %arg8[%c2_69, %c0_70, %c0_71], %116 {strides = array<i32>} : memref<4x8x1xf32, #tpu.memory_space<vmem>>, vector<1x8x1xf32>,
    %117 = vector.extract_strided_slice %4 {offsets = [0, 24], sizes = [8, 8], strides = [1, 1]} : vector<8x32xbf16> to vector<8x8xbf16>
    %118 = vector.extract_strided_slice %6 {offsets = [0, 24], sizes = [8, 8], strides = [1, 1]} : vector<8x32xbf16> to vector<8x8xbf16>
    %119 = vector.extract_strided_slice %8 {offsets = [0, 24], sizes = [8, 8], strides = [1, 1]} : vector<8x32xbf16> to vector<8x8xbf16>
    %cst_72 = arith.constant dense<0.000000e+00> : vector<8x8xf32>
    %120 = tpu.matmul %117, %118, %cst_72 {dimension_numbers = #tpu.dot_dimension_numbers<[1], [1], [0], [0], [0, 0, 1, 0], [], []>} : vector<8x8xbf16>, vector<8x8xbf16>, vector<8x8xf32> -> vector<8x8xf32>
    %c3 = arith.constant 3 : index
    %c0_73 = arith.constant 0 : index
    %c0_74 = arith.constant 0 : index
    %121 = vector.load %arg8[%c3, %c0_73, %c0_74] : memref<4x8x1xf32, #tpu.memory_space<vmem>>, vector<1x8x1xf32>
    %122 = vector.shape_cast %121 : vector<1x8x1xf32> to vector<8x1xf32>
    %cst_75 = arith.constant dense<0xFF800000> : vector<8xf32>
    %123 = vector.multi_reduction <maximumf>, %120, %cst_75 [1] : vector<8x8xf32> to vector<8xf32>
    %124 = vector.shape_cast %123 : vector<8xf32> to vector<8x1xf32>
    %125 = arith.maximumf %122, %124 : vector<8x1xf32>
    %126 = arith.subf %122, %125 : vector<8x1xf32>
    %127 = math.exp %126 : vector<8x1xf32>
    %128 = vector.broadcast %125 : vector<8x1xf32> to vector<8x8xf32>
    %129 = arith.subf %120, %128 : vector<8x8xf32>
    %130 = math.exp %129 : vector<8x8xf32>
    %c3_76 = arith.constant 3 : index
    %c0_77 = arith.constant 0 : index
    %c0_78 = arith.constant 0 : index
    %131 = vector.load %arg9[%c3_76, %c0_77, %c0_78] : memref<4x8x1xf32, #tpu.memory_space<vmem>>, vector<1x8x1xf32>
    %132 = vector.shape_cast %131 : vector<1x8x1xf32> to vector<8x1xf32>
    %133 = arith.mulf %127, %132 : vector<8x1xf32>
    %cst_79 = arith.constant dense<0.000000e+00> : vector<8xf32>
    %134 = vector.multi_reduction <add>, %130, %cst_79 [1] : vector<8x8xf32> to vector<8xf32>
    %135 = vector.shape_cast %134 : vector<8xf32> to vector<8x1xf32>
    %136 = arith.addf %133, %135 : vector<8x1xf32>
    %c3_80 = arith.constant 3 : index
    %c0_81 = arith.constant 0 : index
    %c0_82 = arith.constant 0 : index
    %137 = vector.load %arg9[%c3_80, %c0_81, %c0_82] : memref<4x8x1xf32, #tpu.memory_space<vmem>>, vector<1x8x1xf32>
    %138 = vector.shape_cast %137 : vector<1x8x1xf32> to vector<8x1xf32>
    %139 = vector.shape_cast %136 : vector<8x1xf32> to vector<1x8x1xf32>
    tpu.vector_store %arg9[%c3_80, %c0_81, %c0_82], %139 {strides = array<i32>} : memref<4x8x1xf32, #tpu.memory_space<vmem>>, vector<1x8x1xf32>,
    %c3_83 = arith.constant 3 : index
    %c0_84 = arith.constant 0 : index
    %c0_85 = arith.constant 0 : index
    %140 = vector.load %arg10[%c3_83, %c0_84, %c0_85] : memref<4x8x8xf32, #tpu.memory_space<vmem>>, vector<1x8x8xf32>
    %141 = vector.shape_cast %140 : vector<1x8x8xf32> to vector<8x8xf32>
    %142 = vector.broadcast %127 : vector<8x1xf32> to vector<8x8xf32>
    %143 = arith.mulf %142, %141 : vector<8x8xf32>
    %144 = arith.truncf %130 : vector<8x8xf32> to vector<8x8xbf16>
    %cst_86 = arith.constant dense<0.000000e+00> : vector<8x8xf32>
    %145 = tpu.matmul %144, %119, %cst_86 {dimension_numbers = #tpu.dot_dimension_numbers<[1], [0], [0], [1], [0, 0, 1, 1], [], []>} : vector<8x8xbf16>, vector<8x8xbf16>, vector<8x8xf32> -> vector<8x8xf32>
    %146 = arith.addf %143, %145 : vector<8x8xf32>
    %c3_87 = arith.constant 3 : index
    %c0_88 = arith.constant 0 : index
    %c0_89 = arith.constant 0 : index
    %147 = vector.load %arg10[%c3_87, %c0_88, %c0_89] : memref<4x8x8xf32, #tpu.memory_space<vmem>>, vector<1x8x8xf32>
    %148 = vector.shape_cast %147 : vector<1x8x8xf32> to vector<8x8xf32>
    %149 = vector.shape_cast %146 : vector<8x8xf32> to vector<1x8x8xf32>
    tpu.vector_store %arg10[%c3_87, %c0_88, %c0_89], %149 {strides = array<i32>} : memref<4x8x8xf32, #tpu.memory_space<vmem>>, vector<1x8x8xf32>,
    %c3_90 = arith.constant 3 : index
    %c0_91 = arith.constant 0 : index
    %c0_92 = arith.constant 0 : index
    %150 = vector.load %arg8[%c3_90, %c0_91, %c0_92] : memref<4x8x1xf32, #tpu.memory_space<vmem>>, vector<1x8x1xf32>
    %151 = vector.shape_cast %150 : vector<1x8x1xf32> to vector<8x1xf32>
    %152 = vector.shape_cast %125 : vector<8x1xf32> to vector<1x8x1xf32>
    tpu.vector_store %arg8[%c3_90, %c0_91, %c0_92], %152 {strides = array<i32>} : memref<4x8x1xf32, #tpu.memory_space<vmem>>, vector<1x8x1xf32>,
    %c0_i32_93 = arith.constant 0 : i32
    %153 = arith.cmpi eq, %arg3, %c0_i32_93 : i32
    %154 = arith.extui %153 : i1 to i32
    %c0_i32_94 = arith.constant 0 : i32
    %155 = arith.cmpi ne, %154, %c0_i32_94 : i32
    scf.if %155 {
      %c0_95 = arith.constant 0 : index
      %c0_96 = arith.constant 0 : index
      %c0_97 = arith.constant 0 : index
      %156 = vector.load %arg9[%c0_95, %c0_96, %c0_97] : memref<4x8x1xf32, #tpu.memory_space<vmem>>, vector<1x8x1xf32>
      %157 = vector.shape_cast %156 : vector<1x8x1xf32> to vector<8x1xf32>
      %cst_98 = arith.constant 1.000000e+00 : f32
      %158 = vector.broadcast %cst_98 : f32 to vector<8x1xf32>
      %159 = arith.divf %158, %157 : vector<8x1xf32>
      %c0_99 = arith.constant 0 : index
      %c0_100 = arith.constant 0 : index
      %c0_101 = arith.constant 0 : index
      %160 = vector.load %arg10[%c0_99, %c0_100, %c0_101] : memref<4x8x8xf32, #tpu.memory_space<vmem>>, vector<1x8x8xf32>
      %161 = vector.shape_cast %160 : vector<1x8x8xf32> to vector<8x8xf32>
      %162 = vector.broadcast %159 : vector<8x1xf32> to vector<8x8xf32>
      %163 = arith.mulf %161, %162 : vector<8x8xf32>
      %164 = arith.truncf %163 : vector<8x8xf32> to vector<8x8xbf16>
      %c0_102 = arith.constant 0 : index
      %c0_103 = arith.constant 0 : index
      %c0_104 = arith.constant 0 : index
      %165 = vector.load %arg7[%c0_102, %c0_103, %c0_104] : memref<1x8x32xbf16, #tpu.memory_space<vmem>>, vector<1x8x8xbf16>
      %166 = vector.shape_cast %165 : vector<1x8x8xbf16> to vector<8x8xbf16>
      %167 = vector.shape_cast %164 : vector<8x8xbf16> to vector<1x8x8xbf16>
      tpu.vector_store %arg7[%c0_102, %c0_103, %c0_104], %167 {strides = array<i32>} : memref<1x8x32xbf16, #tpu.memory_space<vmem>>, vector<1x8x8xbf16>,
      %c1_105 = arith.constant 1 : index
      %c0_106 = arith.constant 0 : index
      %c0_107 = arith.constant 0 : index
      %168 = vector.load %arg9[%c1_105, %c0_106, %c0_107] : memref<4x8x1xf32, #tpu.memory_space<vmem>>, vector<1x8x1xf32>
      %169 = vector.shape_cast %168 : vector<1x8x1xf32> to vector<8x1xf32>
      %cst_108 = arith.constant 1.000000e+00 : f32
      %170 = vector.broadcast %cst_108 : f32 to vector<8x1xf32>
      %171 = arith.divf %170, %169 : vector<8x1xf32>
      %c1_109 = arith.constant 1 : index
      %c0_110 = arith.constant 0 : index
      %c0_111 = arith.constant 0 : index
      %172 = vector.load %arg10[%c1_109, %c0_110, %c0_111] : memref<4x8x8xf32, #tpu.memory_space<vmem>>, vector<1x8x8xf32>
      %173 = vector.shape_cast %172 : vector<1x8x8xf32> to vector<8x8xf32>
      %174 = vector.broadcast %171 : vector<8x1xf32> to vector<8x8xf32>
      %175 = arith.mulf %173, %174 : vector<8x8xf32>
      %176 = arith.truncf %175 : vector<8x8xf32> to vector<8x8xbf16>
      %c0_112 = arith.constant 0 : index
      %c0_113 = arith.constant 0 : index
      %c8 = arith.constant 8 : index
      %177 = vector.load %arg7[%c0_112, %c0_113, %c8] : memref<1x8x32xbf16, #tpu.memory_space<vmem>>, vector<1x8x8xbf16>
      %178 = vector.shape_cast %177 : vector<1x8x8xbf16> to vector<8x8xbf16>
      %179 = vector.shape_cast %176 : vector<8x8xbf16> to vector<1x8x8xbf16>
      tpu.vector_store %arg7[%c0_112, %c0_113, %c8], %179 {strides = array<i32>} : memref<1x8x32xbf16, #tpu.memory_space<vmem>>, vector<1x8x8xbf16>,
      %c2_114 = arith.constant 2 : index
      %c0_115 = arith.constant 0 : index
      %c0_116 = arith.constant 0 : index
      %180 = vector.load %arg9[%c2_114, %c0_115, %c0_116] : memref<4x8x1xf32, #tpu.memory_space<vmem>>, vector<1x8x1xf32>
      %181 = vector.shape_cast %180 : vector<1x8x1xf32> to vector<8x1xf32>
      %cst_117 = arith.constant 1.000000e+00 : f32
      %182 = vector.broadcast %cst_117 : f32 to vector<8x1xf32>
      %183 = arith.divf %182, %181 : vector<8x1xf32>
      %c2_118 = arith.constant 2 : index
      %c0_119 = arith.constant 0 : index
      %c0_120 = arith.constant 0 : index
      %184 = vector.load %arg10[%c2_118, %c0_119, %c0_120] : memref<4x8x8xf32, #tpu.memory_space<vmem>>, vector<1x8x8xf32>
      %185 = vector.shape_cast %184 : vector<1x8x8xf32> to vector<8x8xf32>
      %186 = vector.broadcast %183 : vector<8x1xf32> to vector<8x8xf32>
      %187 = arith.mulf %185, %186 : vector<8x8xf32>
      %188 = arith.truncf %187 : vector<8x8xf32> to vector<8x8xbf16>
      %c0_121 = arith.constant 0 : index
      %c0_122 = arith.constant 0 : index
      %c16 = arith.constant 16 : index
      %189 = vector.load %arg7[%c0_121, %c0_122, %c16] : memref<1x8x32xbf16, #tpu.memory_space<vmem>>, vector<1x8x8xbf16>
      %190 = vector.shape_cast %189 : vector<1x8x8xbf16> to vector<8x8xbf16>
      %191 = vector.shape_cast %188 : vector<8x8xbf16> to vector<1x8x8xbf16>
      tpu.vector_store %arg7[%c0_121, %c0_122, %c16], %191 {strides = array<i32>} : memref<1x8x32xbf16, #tpu.memory_space<vmem>>, vector<1x8x8xbf16>,
      %c3_123 = arith.constant 3 : index
      %c0_124 = arith.constant 0 : index
      %c0_125 = arith.constant 0 : index
      %192 = vector.load %arg9[%c3_123, %c0_124, %c0_125] : memref<4x8x1xf32, #tpu.memory_space<vmem>>, vector<1x8x1xf32>
      %193 = vector.shape_cast %192 : vector<1x8x1xf32> to vector<8x1xf32>
      %cst_126 = arith.constant 1.000000e+00 : f32
      %194 = vector.broadcast %cst_126 : f32 to vector<8x1xf32>
      %195 = arith.divf %194, %193 : vector<8x1xf32>
      %c3_127 = arith.constant 3 : index
      %c0_128 = arith.constant 0 : index
      %c0_129 = arith.constant 0 : index
      %196 = vector.load %arg10[%c3_127, %c0_128, %c0_129] : memref<4x8x8xf32, #tpu.memory_space<vmem>>, vector<1x8x8xf32>
      %197 = vector.shape_cast %196 : vector<1x8x8xf32> to vector<8x8xf32>
      %198 = vector.broadcast %195 : vector<8x1xf32> to vector<8x8xf32>
      %199 = arith.mulf %197, %198 : vector<8x8xf32>
      %200 = arith.truncf %199 : vector<8x8xf32> to vector<8x8xbf16>
      %c0_130 = arith.constant 0 : index
      %c0_131 = arith.constant 0 : index
      %c24 = arith.constant 24 : index
      %201 = vector.load %arg7[%c0_130, %c0_131, %c24] : memref<1x8x32xbf16, #tpu.memory_space<vmem>>, vector<1x8x8xbf16>
      %202 = vector.shape_cast %201 : vector<1x8x8xbf16> to vector<8x8xbf16>
      %203 = vector.shape_cast %200 : vector<8x8xbf16> to vector<1x8x8xbf16>
      tpu.vector_store %arg7[%c0_130, %c0_131, %c24], %203 {strides = array<i32>} : memref<1x8x32xbf16, #tpu.memory_space<vmem>>, vector<1x8x8xbf16>,
    } else {
    }
    return
  }
  func.func @transform_0(%arg0: i32, %arg1: i32, %arg2: i32, %arg3: i32) -> (i32, i32, i32) {
    %c1_i32 = arith.constant 1 : i32
    %0 = arith.muli %arg0, %c1_i32 : i32
    %1 = arith.addi %0, %arg2 : i32
    %c0_i32 = arith.constant 0 : i32
    %c0_i32_0 = arith.constant 0 : i32
    return %arg1, %1, %c0_i32 : i32, i32, i32
  }
  func.func @transform_1(%arg0: i32, %arg1: i32, %arg2: i32, %arg3: i32) -> (i32, i32, i32) {
    %c1_i32 = arith.constant 1 : i32
    %0 = arith.addi %c1_i32, %arg1 : i32
    %c1_i32_0 = arith.constant 1 : i32
    %1 = arith.muli %arg0, %c1_i32_0 : i32
    %2 = arith.addi %1, %arg3 : i32
    %c0_i32 = arith.constant 0 : i32
    %c0_i32_1 = arith.constant 0 : i32
    return %0, %2, %c0_i32 : i32, i32, i32
  }
  func.func @transform_2(%arg0: i32, %arg1: i32, %arg2: i32, %arg3: i32) -> (i32, i32, i32) {
    %c2_i32 = arith.constant 2 : i32
    %0 = arith.addi %c2_i32, %arg1 : i32
    %c1_i32 = arith.constant 1 : i32
    %1 = arith.muli %arg0, %c1_i32 : i32
    %2 = arith.addi %1, %arg3 : i32
    %c0_i32 = arith.constant 0 : i32
    %c0_i32_0 = arith.constant 0 : i32
    return %0, %2, %c0_i32 : i32, i32, i32
  }
  func.func @transform_3(%arg0: i32, %arg1: i32, %arg2: i32, %arg3: i32) -> (i32, i32, i32) {
    %c1_i32 = arith.constant 1 : i32
    %0 = arith.muli %arg0, %c1_i32 : i32
    %1 = arith.addi %0, %arg2 : i32
    %c0_i32 = arith.constant 0 : i32
    %c0_i32_0 = arith.constant 0 : i32
    return %arg1, %1, %c0_i32 : i32, i32, i32
  }
}

</mosaic_0001>

<llo_original>
// kernel: attention_forward.3
$region0: #{attention_forward.3}
  #allocation0 [shape = 'u32[]', space=smem, size = 0x4, offset = 0x4, fixed_abs, tag = 'smem constant byte address 0x4 - core index']
  #allocation1 [shape = 'u32[144,128]{1,0:T(1,128)}', space=vmem, size = 0x12000, scoped, tag = 'internal scratch']
  #allocation2 [shape = 'f32[16,32]{1,0:T(8,128)}', space=vmem, size = 0x2000, scoped, tag = 'scratch operand']
  %s0 = inlined_call_operand.vmem [shape: bf16[16,32], index: 0, kind: input, shape index: {}]
  %s1 = inlined_call_operand.hbm [shape: bf16[3,32,32], index: 1, kind: input, shape index: {}]
  %s2 = inlined_call_operand.vmem [shape: f32[3,1,32], index: 2, kind: input, shape index: {}]
  %s3 = inlined_call_operand.vmem [shape: bf16[3,16,32], index: 3, kind: output, shape index: {}]
  %s4 = sld [smem:[#allocation0]]
  $region57: #{attention_forward.3} parent=0
    _
  %s6 = ssub.s32 1, %s4
  %s7 = scalar_select 0, %s6, %s4
  $region1: #{attention_forward.3} parent=0
    #allocation3 [shape = 'u8[16384]{0}', space=vmem, size = 0x4000, scoped, tag = 'input window, operand 1']
    #allocation4 [shape = 's32[2]{0}', space=sflag, size = 0x8, scoped, tag = 'scoped memory for attention_forward.3']
    %8 = vsyncpa [#allocation4], 0
    %s9 = scalar_lea.sflag [#allocation4], 1
    %10 = vsyncpa %s9, 0
    loop: start=0, step=1, limit=5
    $region2: #{attention_forward.3} parent=1 // loop_pre_header
      _
    $region3: #{attention_forward.3} parent=1 // loop_header
      %s12 = sphi 0, %s16
      %p13 = scmp.ge.s32.totalorder %s12, 5
      %s19 = sphi 0, %s38
      %s20 = sphi 0, %s34
      %s21 = sphi 0, %s30
      %s22 = sphi 0, %s19
      %s23 = sphi 0, %s20
      %s24 = sphi 0, %s21
      %s25 = sphi 0, %s22
      %s26 = sphi 0, %s23
      %s27 = sphi 0, %s24
      %s43 = sphi 0, %s45
      %s46 = sphi 0, %s43
      %s47 = sphi 0, %s46
      %s63 = sphi 0, %s47
      %s71 = sphi 0, %s73
      %s74 = sphi 0, %s71
      %s75 = sphi 0, %s74
      %s91 = sphi 0, %s75
      %s97 = sphi 0, %s99
      %s100 = sphi 0, %s97
      %s101 = sphi 0, %s100
      %s117 = sphi 0, %s101
      %s125 = sphi 0, %s127
      %s128 = sphi 0, %s125
      %s129 = sphi 0, %s128
      %s145 = sphi 0, %s129
    $region4: #{attention_forward.3} parent=1 // loop_header_branch
      %15 = sbr.rel (%p13) target = $region8
    $region5: #{attention_forward.3} parent=1 // loop_body
      %s17 = ssub.s32 %s12, 1
      %s18 = ssub.s32 %s12, 2
      %s28 = sadd.s32 1, %s21
      %p29 = scmp.ge.s32.totalorder %s28, 1
      %s30 = scalar_select %p29, 0, %s28
      %s31 = sadd.s32 1, %s20
      %s32 = scalar_select %p29, %s31, %s20
      %p33 = scmp.ge.s32.totalorder %s32, 1
      %s34 = scalar_select %p33, 0, %s32
      %s35 = sadd.s32 1, %s19
      %s36 = scalar_select %p33, %s35, %s19
      %p37 = scmp.ge.s32.totalorder %s36, 3
      %s38 = scalar_select %p37, 0, %s36
      %s39 = ssub.s32 %s20, %s34
      %s40 = ssub.s32 %s21, %s30
      %s41 = sor.u32 %s39, %s40
      %p42 = scmp.eq.s32.totalorder %s41, 0
      %s44 = sadd.s32 %s43, 1
      %s45 = scalar_select %p42, %s43, %s44
      %p48 = pneg %p42
      %p49 = scmp.eq.s32.totalorder %s12, 2
      %p50 = por %p48, %p49
      %p51 = scmp.ne.s32.totalorder %s43, %s46
      %p52 = scmp.eq.s32.totalorder %s12, 0
      %p53 = por %p51, %p52
      %p54 = scmp.ne.s32.totalorder %s43, %s46
      %p55 = scmp.eq.s32.totalorder %s17, 2
      %p56 = por %p54, %p55
      %p57 = scmp.ne.s32.totalorder %s46, %s47
      %p58 = scmp.eq.s32.totalorder %s17, 0
      %p59 = por %p57, %p58
      %p60 = scmp.ne.s32.totalorder %s46, %s47
      %p61 = scmp.eq.s32.totalorder %s18, 2
      %p62 = por %p60, %p61
      %p64 = scmp.ne.s32.totalorder %s47, %s63
      %p65 = scmp.eq.s32.totalorder %s18, 0
      %p66 = por %p64, %p65
      %s67 = ssub.s32 %s19, %s38
      %s68 = ssub.s32 %s21, %s30
      %s69 = sor.u32 %s67, %s68
      %p70 = scmp.eq.s32.totalorder %s69, 0
      %s72 = sadd.s32 %s71, 1
      %s73 = scalar_select %p70, %s71, %s72
      %p76 = pneg %p70
      %p77 = scmp.eq.s32.totalorder %s12, 2
      %p78 = por %p76, %p77
      %p79 = scmp.ne.s32.totalorder %s71, %s74
      %p80 = scmp.eq.s32.totalorder %s12, 0
      %p81 = por %p79, %p80
      %p82 = scmp.ne.s32.totalorder %s71, %s74
      %p83 = scmp.eq.s32.totalorder %s17, 2
      %p84 = por %p82, %p83
      %p85 = scmp.ne.s32.totalorder %s74, %s75
      %p86 = scmp.eq.s32.totalorder %s17, 0
      %p87 = por %p85, %p86
      %p88 = scmp.ne.s32.totalorder %s74, %s75
      %p89 = scmp.eq.s32.totalorder %s18, 2
      %p90 = por %p88, %p89
      %p92 = scmp.ne.s32.totalorder %s75, %s91
      %p93 = scmp.eq.s32.totalorder %s18, 0
      %p94 = por %p92, %p93
      %s95 = ssub.s32 %s19, %s38
      %p96 = scmp.eq.s32.totalorder %s95, 0
      %s98 = sadd.s32 %s97, 1
      %s99 = scalar_select %p96, %s97, %s98
      %p102 = pneg %p96
      %p103 = scmp.eq.s32.totalorder %s12, 2
      %p104 = por %p102, %p103
      %p105 = scmp.ne.s32.totalorder %s97, %s100
      %p106 = scmp.eq.s32.totalorder %s12, 0
      %p107 = por %p105, %p106
      %p108 = scmp.ne.s32.totalorder %s97, %s100
      %p109 = scmp.eq.s32.totalorder %s17, 2
      %p110 = por %p108, %p109
      %p111 = scmp.ne.s32.totalorder %s100, %s101
      %p112 = scmp.eq.s32.totalorder %s17, 0
      %p113 = por %p111, %p112
      %p114 = scmp.ne.s32.totalorder %s100, %s101
      %p115 = scmp.eq.s32.totalorder %s18, 2
      %p116 = por %p114, %p115
      %p118 = scmp.ne.s32.totalorder %s101, %s117
      %p119 = scmp.eq.s32.totalorder %s18, 0
      %p120 = por %p118, %p119
      %s121 = ssub.s32 %s19, %s38
      %s122 = ssub.s32 %s20, %s34
      %s123 = sor.u32 %s121, %s122
      %p124 = scmp.eq.s32.totalorder %s123, 0
      %s126 = sadd.s32 %s125, 1
      %s127 = scalar_select %p124, %s125, %s126
      %p130 = pneg %p124
      %p131 = scmp.eq.s32.totalorder %s12, 2
      %p132 = por %p130, %p131
      %p133 = scmp.ne.s32.totalorder %s125, %s128
      %p134 = scmp.eq.s32.totalorder %s12, 0
      %p135 = por %p133, %p134
      %p136 = scmp.ne.s32.totalorder %s125, %s128
      %p137 = scmp.eq.s32.totalorder %s17, 2
      %p138 = por %p136, %p137
      %p139 = scmp.ne.s32.totalorder %s128, %s129
      %p140 = scmp.eq.s32.totalorder %s17, 0
      %p141 = por %p139, %p140
      %p142 = scmp.ne.s32.totalorder %s128, %s129
      %p143 = scmp.eq.s32.totalorder %s18, 2
      %p144 = por %p142, %p143
      %p146 = scmp.ne.s32.totalorder %s129, %s145
      %p147 = scmp.eq.s32.totalorder %s18, 0
      %p148 = por %p146, %p147
      %p149 = scmp.le.s32.totalorder 1, %s12
      %p150 = scmp.lt.s32.totalorder %s12, 4
      %p151 = pnand %p149, %p150
      %p152 = pneg %p151
      // Predicated region
      $region9: #{attention_forward.3} parent=5 // pred_check
        _
      $region10: #{attention_forward.3} parent=5 // pred_check_branch
        %154 = sbr.rel (%p151) target = $region12
      $region11: #{attention_forward.3} parent=5 // pred_region
        %s155 = ssub.s32 %s12, 1
        // Predicated region
        $region13: #{attention_forward.3} parent=11 // pred_check
          %p156 = pneg %p59
        $region14: #{attention_forward.3} parent=11 // pred_check_branch
          %158 = sbr.rel (%p156) target = $region16
        $region15: #{attention_forward.3} parent=11 // pred_region
          %s159 = smul.u32 2, %s23
          %p160 = scmp.lt.s32.totalorder %s159, 1
          %s161 = scalar_select %p160, %s159, 1
          %p162 = scmp.lt.s32.totalorder %s24, 0
          %s163 = scalar_select %p162, %s24, 0
          %s164 = sadd.s32 %s163, %s161
          %s165 = smul.addr %s164, 4
          %s166 = scalar_lea.vmem %s0, %s165
          %s167 = smul.u32 2, %s23
        $region16: #{attention_forward.3} parent=11 // pred_fallthru
          _
      $region12: #{attention_forward.3} parent=5 // pred_fallthru
        _
      %p168 = scmp.lt.s32.totalorder %s12, 3
      // Predicated region
      $region17: #{attention_forward.3} parent=5 // pred_check
        %p169 = pneg %p168
      $region18: #{attention_forward.3} parent=5 // pred_check_branch
        %171 = sbr.rel (%p169) target = $region20
      $region19: #{attention_forward.3} parent=5 // pred_region
        // Predicated region
        $region21: #{attention_forward.3} parent=19 // pred_check
          %p172 = pneg %p81
        $region22: #{attention_forward.3} parent=19 // pred_check_branch
          %174 = sbr.rel (%p172) target = $region24
        $region23: #{attention_forward.3} parent=19 // pred_region
          %s175 = sand.u32 %s71, 1
          %s176 = scalar_lea.sflag [#allocation4], %s175
          %s177 = sand.u32 %s71, 1
          %s178 = smul.addr %s177, 16
          %s179 = scalar_lea.vmem [#allocation3], %s178
          %s180 = smul.u32 4, %s21
          %s182 = ssub.s32 256, 256
          %183 = vsyncadd %s176, %s182
          %s184 = smul.addr %s19, 4
          %s185 = sadd.s32 %s180, %s184
          %s186 = smul.addr %s185, 64
          %s187 = scalar_lea.hbm %s1, %s186
          %s188 = sshll.u32 %s179, 4
          %s189 = int_to_ptr.vmem [resolvable:$true] %s188
          %194 = dma.hbm_to_vmem [thread:$0]  %s187, 256, %s189, %s176, 64, 64, 4
        $region24: #{attention_forward.3} parent=19 // pred_fallthru
          _
        // Predicated region
        $region25: #{attention_forward.3} parent=19 // pred_check
          %p195 = pneg %p107
        $region26: #{attention_forward.3} parent=19 // pred_check_branch
          %197 = sbr.rel (%p195) target = $region28
        $region27: #{attention_forward.3} parent=19 // pred_region
          %p198 = scmp.lt.s32.totalorder %s19, 2
          %s199 = scalar_select %p198, %s19, 2
          %s200 = scalar_lea.vmem %s2, %s199
        $region28: #{attention_forward.3} parent=19 // pred_fallthru
          _
      $region20: #{attention_forward.3} parent=5 // pred_fallthru
        _
      %p201 = scmp.le.s32.totalorder 1, %s12
      %p202 = scmp.lt.s32.totalorder %s12, 4
      %p203 = pnand %p201, %p202
      %p204 = pneg %p203
      // Predicated region
      $region29: #{attention_forward.3} parent=5 // pred_check
        _
      $region30: #{attention_forward.3} parent=5 // pred_check_branch
        %206 = sbr.rel (%p203) target = $region32
      $region31: #{attention_forward.3} parent=5 // pred_region
        %s207 = ssub.s32 %s12, 1
        %s208 = sand.u32 %s74, 1
        %s209 = scalar_lea.sflag [#allocation4], %s208
        %s210 = sand.u32 %s74, 1
        %s211 = smul.addr %s210, 16
        %s212 = scalar_lea.vmem [#allocation3], %s211
        // Predicated region
        $region33: #{attention_forward.3} parent=31 // pred_check
          %p213 = pneg %p87
        $region34: #{attention_forward.3} parent=31 // pred_check_branch
          %215 = sbr.rel (%p213) target = $region36
        $region35: #{attention_forward.3} parent=31 // pred_region
          %216 = dma.done %s209, 256
        $region36: #{attention_forward.3} parent=31 // pred_fallthru
          _
        %s217 = smul.u32 2, %s23
        %p218 = scmp.lt.s32.totalorder %s217, 1
        %s219 = scalar_select %p218, %s217, 1
        %p220 = scmp.lt.s32.totalorder %s24, 0
        %s221 = scalar_select %p220, %s24, 0
        %s222 = sadd.s32 %s221, %s219
        %s223 = smul.addr %s222, 4
        %s224 = scalar_lea.vmem %s0, %s223
        %p225 = pneg %p59
        %p226 = pneg %p56
        %s227 = sand.u32 %s74, 1
        %s228 = scalar_lea.sflag [#allocation4], %s227
        %s229 = sand.u32 %s74, 1
        %s230 = smul.addr %s229, 16
        %s231 = scalar_lea.vmem [#allocation3], %s230
        %p232 = pneg %p87
        %p233 = pneg %p84
        %p234 = scmp.lt.s32.totalorder %s22, 2
        %s235 = scalar_select %p234, %s22, 2
        %s236 = scalar_lea.vmem %s2, %s235
        %p237 = pneg %p113
        %p238 = pneg %p110
        %p239 = pneg %p141
        %p240 = pneg %p138
        %s241 = smul.u32 2, %s23
        %p242 = scmp.lt.s32.totalorder %s22, 2
        %s243 = scalar_select %p242, %s22, 2
        %p244 = scmp.lt.s32.totalorder %s241, 1
        %s245 = scalar_select %p244, %s241, 1
        %s246 = smul.addr %s243, 2
        %s247 = sadd.s32 %s245, %s246
        %s248 = smul.addr %s247, 4
        %s249 = scalar_lea.vmem %s3, %s248
        %s250 = smul.u32 2, %s23
        %p251 = scmp.lt.s32.totalorder %s250, 1
        %s252 = scalar_select %p251, %s250, 1
        %p253 = scmp.lt.s32.totalorder %s24, 0
        %s254 = scalar_select %p253, %s24, 0
        %s255 = sadd.s32 %s254, %s252
        %s256 = smul.addr %s255, 4
        %s257 = scalar_lea.vmem %s0, %s256
        %s258 = smul.u32 2, %s23
        %s259 = smul.u32 4, %s24
        %p260 = scmp.lt.s32.totalorder %s22, 2
        %s261 = scalar_select %p260, %s22, 2
        %s262 = scalar_lea.vmem %s2, %s261
        %s263 = smul.u32 2, %s23
        %p264 = scmp.lt.s32.totalorder %s22, 2
        %s265 = scalar_select %p264, %s22, 2
        %p266 = scmp.lt.s32.totalorder %s263, 1
        %s267 = scalar_select %p266, %s263, 1
        %s268 = smul.addr %s265, 2
        %s269 = sadd.s32 %s267, %s268
        %s270 = smul.addr %s269, 4
        %s271 = scalar_lea.vmem %s3, %s270
        %s272 = smul.u32 2, %s23
        %p274 = scmp.eq.s32.totalorder %s24, 0
        // Predicated region
        $region37: #{attention_forward.3} parent=31 // pred_check
          %p275 = pneg %p274
        $region38: #{attention_forward.3} parent=31 // pred_check_branch
          %277 = sbr.rel (%p275) target = $region40
        $region39: #{attention_forward.3} parent=31 // pred_region
          %vm278 = vcmask 261120
          %279 = vst.msk [vmem:[#allocation2] sm:$0xff] %vm278, 0.0
          %280 = vst.msk [vmem:[#allocation2 + $0x8] sm:$0xff] %vm278, 0.0
        $region40: #{attention_forward.3} parent=31 // pred_fallthru
          _
        %v281 = vld [vmem:[#allocation2] sm:$0xff]
        %v282 = vld [vmem:[#allocation2 + $0x8] sm:$0xff]
        %v283 = vld [vmem:[%s257] sm:$0xf]
        %v284 = vld [vmem:[%s257 + $0x4] sm:$0xf]
        %v285 = vld [vmem:[%s212] sm:$0xf]
        %v286 = vld [vmem:[%s212 + $0x4] sm:$0xf]
        %v287 = vld [vmem:[%s212 + $0x8] sm:$0xf]
        %v288 = vld [vmem:[%s212 + $0xc] sm:$0xf]
        %v291 = vunpack.c.l.b16 %v283
        %v292 = vunpack.c.l.b16 %v284
        %v293 = vpack.c.b16 %v292, %v291
        %v298 = vunpack.c.l.b16 %v285
        %v299 = vunpack.c.l.b16 %v286
        %v300 = vunpack.c.l.b16 %v287
        %v301 = vunpack.c.l.b16 %v288
        %v302 = vpack.c.b16 %v299, %v298
        %v303 = vpack.c.b16 %v301, %v300
        %vm306 = vcmask 261120
        %v308 = vsel %vm306, %v293, 0
        %310 = vmatprep.subr.bf16.mxu0 0
        %311 = vmatpush1.bf16.msra.mxu0 %v302
        %312 = vmatprep.subr.bf16.mxu0 0
        %313 = vmatpush1.bf16.msra.mxu0 %v303
        %314 = vmatprep.subr.bf16.mxu0 0
        %315 = vmatpush1.bf16.msra.mxu0 0
        %316 = vmatprep.subr.bf16.mxu0 0
        %317 = vmatpush1.bf16.msra.mxu0 0
        %318 = vmatprep.subr.bf16.mxu0 0
        %319 = vmatpush1.bf16.msra.mxu0 0
        %320 = vmatprep.subr.bf16.mxu0 0
        %321 = vmatpush1.bf16.msra.mxu0 0
        %322 = vmatprep.subr.bf16.mxu0 0
        %323 = vmatpush1.bf16.msra.mxu0 0
        %324 = vmatprep.subr.bf16.mxu0 0
        %325 = vmatpush1.bf16.msra.mxu0 0
        %326 = vmatprep.subr.bf16.mxu0 0
        %327 = vmatpush1.bf16.msra.mxu0 0
        %328 = vmatprep.subr.bf16.mxu0 0
        %329 = vmatpush1.bf16.msra.mxu0 0
        %330 = vmatprep.subr.bf16.mxu0 0
        %331 = vmatpush1.bf16.msra.mxu0 0
        %332 = vmatprep.subr.bf16.mxu0 0
        %333 = vmatpush1.bf16.msra.mxu0 0
        %334 = vmatprep.subr.bf16.mxu0 0
        %335 = vmatpush1.bf16.msra.mxu0 0
        %336 = vmatprep.subr.bf16.mxu0 0
        %337 = vmatpush1.bf16.msra.mxu0 0
        %338 = vmatprep.subr.bf16.mxu0 0
        %339 = vmatpush1.bf16.msra.mxu0 0
        %340 = vmatprep.subr.bf16.mxu0 0
        %341 = vmatpush1.bf16.msra.mxu0 0
        %342 = vmatprep.mubr.bf16.mxu0 0
        %343 = vmatmul.mubr.bf16.gmra.mrb[0].mxu0 %v308
        %v344 = vpop.f32.mrb[0].mxu0
        %v345 = vadd.f32 0.0, %v344
        %v346 = vpop.f32.mrb[0].mxu0
        %v347 = vpop.f32.mrb[0].mxu0
        %v348 = vadd.f32 0.0, %v347
        %v349 = vpop.f32.mrb[0].mxu0
        %350 = vdwg.mxu0
        %v351 = vadd.f32 %v281, %v345
        %v352 = vadd.f32 %v282, %v348
        %353 = vst.msk [vmem:[#allocation2] sm:$0xff] %vm306, %v351
        %354 = vst.msk [vmem:[#allocation2 + $0x8] sm:$0xff] %vm306, %v352
        // Predicated region
        $region41: #{attention_forward.3} parent=31 // pred_check
          %p355 = pneg %p274
        $region42: #{attention_forward.3} parent=31 // pred_check_branch
          %357 = sbr.rel (%p355) target = $region44
        $region43: #{attention_forward.3} parent=31 // pred_region
          %v358 = vld [vmem:[#allocation2] sm:$0xff]
          %v359 = vld [vmem:[#allocation2 + $0x8] sm:$0xff]
          %v360 = vld [vmem:[%s262] sm:$0x1]
          %v362 = vlaneseq
          %v363 = vshrl.u32 %v362, 7
          %v364 = vsub.s32 0, %v363
          %v365 = vrot.slane %v360, %v364
          %v367 = vadd.f32 %v358, %v365
          %v368 = vadd.f32 %v359, %v365
          %v369 = vpack.c.bf16 %v368, %v367
          %v371 = vunpack.c.l.b16 %v369
          %v372 = vunpack.c.h.b16 %v369
          %v373 = vpack.c.b16 %v371, %v371
          %v374 = vpack.c.b16 %v372, %v372
          %vm377 = vcmask 257024
          %378 = vst.msk [vmem:[%s271] sm:$0xf] %vm377, %v373
          %379 = vst.msk [vmem:[%s271 + $0x4] sm:$0xf] %vm377, %v374
        $region44: #{attention_forward.3} parent=31 // pred_fallthru
          _
        %s380 = smul.u32 2, %s23
        %p381 = scmp.lt.s32.totalorder %s22, 2
        %s382 = scalar_select %p381, %s22, 2
        %p383 = scmp.lt.s32.totalorder %s380, 1
        %s384 = scalar_select %p383, %s380, 1
        %s385 = smul.addr %s382, 2
        %s386 = sadd.s32 %s384, %s385
        %s387 = smul.addr %s386, 4
        %s388 = scalar_lea.vmem %s3, %s387
        // Predicated region
        $region45: #{attention_forward.3} parent=31 // pred_check
          %p389 = pneg %p138
        $region46: #{attention_forward.3} parent=31 // pred_check_branch
          %391 = sbr.rel (%p389) target = $region48
        $region47: #{attention_forward.3} parent=31 // pred_region
          %s392 = smul.u32 2, %s23
        $region48: #{attention_forward.3} parent=31 // pred_fallthru
          _
      $region32: #{attention_forward.3} parent=5 // pred_fallthru
        _
      %p393 = scmp.le.s32.totalorder 2, %s12
      // Predicated region
      $region49: #{attention_forward.3} parent=5 // pred_check
        %p394 = pneg %p393
      $region50: #{attention_forward.3} parent=5 // pred_check_branch
        %396 = sbr.rel (%p394) target = $region52
      $region51: #{attention_forward.3} parent=5 // pred_region
        %s397 = ssub.s32 %s12, 2
        // Predicated region
        $region53: #{attention_forward.3} parent=51 // pred_check
          %p398 = pneg %p144
        $region54: #{attention_forward.3} parent=51 // pred_check_branch
          %400 = sbr.rel (%p398) target = $region56
        $region55: #{attention_forward.3} parent=51 // pred_region
          %s401 = smul.u32 2, %s26
          %p402 = scmp.lt.s32.totalorder %s25, 2
          %s403 = scalar_select %p402, %s25, 2
          %p404 = scmp.lt.s32.totalorder %s401, 1
          %s405 = scalar_select %p404, %s401, 1
          %s406 = smul.addr %s403, 2
          %s407 = sadd.s32 %s405, %s406
          %s408 = smul.addr %s407, 4
          %s409 = scalar_lea.vmem %s3, %s408
        $region56: #{attention_forward.3} parent=51 // pred_fallthru
          _
      $region52: #{attention_forward.3} parent=5 // pred_fallthru
        _
    $region6: #{attention_forward.3} parent=1 // loop_footer
      %s16 = sadd.s32 1, %s12
    $region7: #{attention_forward.3} parent=1 // loop_footer_branch
      %11 = sbr.rel target = $region3
    $region8: #{attention_forward.3} parent=1 // loop_exit
      _
    %410 = vsyncpa [#allocation4], 1
    %s411 = scalar_lea.sflag [#allocation4], 1
    %412 = vsyncpa %s411, 1

// kernel: attention_forward.5
$region0: #{attention_forward.5}
  #allocation0 [shape = 'u32[]', space=smem, size = 0x4, offset = 0x4, fixed_abs, tag = 'smem constant byte address 0x4 - core index']
  #allocation1 [shape = 'u32[144,128]{1,0:T(1,128)}', space=vmem, size = 0x12000, scoped, tag = 'internal scratch']
  #allocation2 [shape = 'f32[16,32]{1,0:T(8,128)}', space=vmem, size = 0x2000, scoped, tag = 'scratch operand']
  %s0 = inlined_call_operand.vmem [shape: bf16[1,16,32], index: 0, kind: input, shape index: {}]
  %s1 = inlined_call_operand.vmem [shape: bf16[1,32,32], index: 1, kind: input, shape index: {}]
  %s2 = inlined_call_operand.vmem [shape: f32[1,32], index: 2, kind: input, shape index: {}]
  %s3 = inlined_call_operand.hbm [shape: f32[16,32], index: 3, kind: output, shape index: {}]
  %s4 = sld [smem:[#allocation0]]
  $region30: #{attention_forward.5} parent=0
    _
  %s6 = ssub.s32 1, %s4
  %s7 = scalar_select 0, %s6, %s4
  $region1: #{attention_forward.5} parent=0
    #allocation3 [shape = 'u8[8192]{0}', space=vmem, size = 0x2000, scoped, tag = 'output window, operand 0, single buffered']
    #allocation4 [shape = 's32[1]{0}', space=sflag, size = 0x4, scoped, tag = 'scoped memory for attention_forward.5']
    %8 = vsyncpa [#allocation4], 0
    // Predicated region
    $region2: #{attention_forward.5} parent=1 // pred_check
      _
    $region3: #{attention_forward.5} parent=1 // pred_check_branch
      %10 = sbr.rel (0) target = $region5
    $region4: #{attention_forward.5} parent=1 // pred_region
      _
    $region5: #{attention_forward.5} parent=1 // pred_fallthru
      _
    // Predicated region
    $region6: #{attention_forward.5} parent=1 // pred_check
      _
    $region7: #{attention_forward.5} parent=1 // pred_check_branch
      %12 = sbr.rel (0) target = $region9
    $region8: #{attention_forward.5} parent=1 // pred_region
      _
    $region9: #{attention_forward.5} parent=1 // pred_fallthru
      _
    // Predicated region
    $region10: #{attention_forward.5} parent=1 // pred_check
      _
    $region11: #{attention_forward.5} parent=1 // pred_check_branch
      %14 = sbr.rel (0) target = $region13
    $region12: #{attention_forward.5} parent=1 // pred_region
      _
    $region13: #{attention_forward.5} parent=1 // pred_fallthru
      _
    %p16 = scmp.eq.s32.totalorder 0, 0
    // Predicated region
    $region14: #{attention_forward.5} parent=1 // pred_check
      %p17 = pneg %p16
    $region15: #{attention_forward.5} parent=1 // pred_check_branch
      %19 = sbr.rel (%p17) target = $region17
    $region16: #{attention_forward.5} parent=1 // pred_region
      %vm20 = vcmask 261120
      %21 = vst.msk [vmem:[#allocation2] sm:$0xff] %vm20, 0.0
      %22 = vst.msk [vmem:[#allocation2 + $0x8] sm:$0xff] %vm20, 0.0
    $region17: #{attention_forward.5} parent=1 // pred_fallthru
      _
    %v23 = vld [vmem:[#allocation2] sm:$0xff]
    %v24 = vld [vmem:[#allocation2 + $0x8] sm:$0xff]
    %v25 = vld [vmem:[%s0] sm:$0xf]
    %v26 = vld [vmem:[%s0 + $0x4] sm:$0xf]
    %v27 = vld [vmem:[%s1] sm:$0xf]
    %v28 = vld [vmem:[%s1 + $0x4] sm:$0xf]
    %v29 = vld [vmem:[%s1 + $0x8] sm:$0xf]
    %v30 = vld [vmem:[%s1 + $0xc] sm:$0xf]
    %v33 = vunpack.c.l.b16 %v25
    %v34 = vunpack.c.l.b16 %v26
    %v35 = vpack.c.b16 %v34, %v33
    %v40 = vunpack.c.l.b16 %v27
    %v41 = vunpack.c.l.b16 %v28
    %v42 = vunpack.c.l.b16 %v29
    %v43 = vunpack.c.l.b16 %v30
    %v44 = vpack.c.b16 %v41, %v40
    %v45 = vpack.c.b16 %v43, %v42
    %vm48 = vcmask 261120
    %v50 = vsel %vm48, %v35, 0
    %52 = vmatprep.subr.bf16.mxu0 0
    %53 = vmatpush1.bf16.msra.mxu0 %v44
    %54 = vmatprep.subr.bf16.mxu0 0
    %55 = vmatpush1.bf16.msra.mxu0 %v45
    %56 = vmatprep.subr.bf16.mxu0 0
    %57 = vmatpush1.bf16.msra.mxu0 0
    %58 = vmatprep.subr.bf16.mxu0 0
    %59 = vmatpush1.bf16.msra.mxu0 0
    %60 = vmatprep.subr.bf16.mxu0 0
    %61 = vmatpush1.bf16.msra.mxu0 0
    %62 = vmatprep.subr.bf16.mxu0 0
    %63 = vmatpush1.bf16.msra.mxu0 0
    %64 = vmatprep.subr.bf16.mxu0 0
    %65 = vmatpush1.bf16.msra.mxu0 0
    %66 = vmatprep.subr.bf16.mxu0 0
    %67 = vmatpush1.bf16.msra.mxu0 0
    %68 = vmatprep.subr.bf16.mxu0 0
    %69 = vmatpush1.bf16.msra.mxu0 0
    %70 = vmatprep.subr.bf16.mxu0 0
    %71 = vmatpush1.bf16.msra.mxu0 0
    %72 = vmatprep.subr.bf16.mxu0 0
    %73 = vmatpush1.bf16.msra.mxu0 0
    %74 = vmatprep.subr.bf16.mxu0 0
    %75 = vmatpush1.bf16.msra.mxu0 0
    %76 = vmatprep.subr.bf16.mxu0 0
    %77 = vmatpush1.bf16.msra.mxu0 0
    %78 = vmatprep.subr.bf16.mxu0 0
    %79 = vmatpush1.bf16.msra.mxu0 0
    %80 = vmatprep.subr.bf16.mxu0 0
    %81 = vmatpush1.bf16.msra.mxu0 0
    %82 = vmatprep.subr.bf16.mxu0 0
    %83 = vmatpush1.bf16.msra.mxu0 0
    %84 = vmatprep.mubr.bf16.mxu0 0
    %85 = vmatmul.mubr.bf16.gmra.mrb[0].mxu0 %v50
    %v86 = vpop.f32.mrb[0].mxu0
    %v87 = vadd.f32 0.0, %v86
    %v88 = vpop.f32.mrb[0].mxu0
    %v89 = vpop.f32.mrb[0].mxu0
    %v90 = vadd.f32 0.0, %v89
    %v91 = vpop.f32.mrb[0].mxu0
    %92 = vdwg.mxu0
    %v93 = vadd.f32 %v23, %v87
    %v94 = vadd.f32 %v24, %v90
    %95 = vst.msk [vmem:[#allocation2] sm:$0xff] %vm48, %v93
    %96 = vst.msk [vmem:[#allocation2 + $0x8] sm:$0xff] %vm48, %v94
    // Predicated region
    $region18: #{attention_forward.5} parent=1 // pred_check
      %p97 = pneg %p16
    $region19: #{attention_forward.5} parent=1 // pred_check_branch
      %99 = sbr.rel (%p97) target = $region21
    $region20: #{attention_forward.5} parent=1 // pred_region
      %v100 = vld [vmem:[#allocation2] sm:$0xff]
      %v101 = vld [vmem:[#allocation2 + $0x8] sm:$0xff]
      %v102 = vld [vmem:[%s2] sm:$0x1]
      %v104 = vlaneseq
      %v105 = vshrl.u32 %v104, 7
      %v106 = vsub.s32 0, %v105
      %v107 = vrot.slane %v102, %v106
      %v109 = vadd.f32 %v100, %v107
      %v110 = vadd.f32 %v101, %v107
      %111 = vst.msk [vmem:[#allocation3] sm:$0xff] %vm48, %v109
      %112 = vst.msk [vmem:[#allocation3 + $0x8] sm:$0xff] %vm48, %v110
    $region21: #{attention_forward.5} parent=1 // pred_fallthru
      _
    // Predicated region
    $region22: #{attention_forward.5} parent=1 // pred_check
      _
    $region23: #{attention_forward.5} parent=1 // pred_check_branch
      %114 = sbr.rel (0) target = $region25
    $region24: #{attention_forward.5} parent=1 // pred_region
      %s116 = ssub.s32 256, 256
      %117 = vsyncadd [#allocation4], %s116
      %s118 = sshll.u32 [#allocation3], 4
      %s119 = int_to_ptr.vmem [resolvable:$true] %s118
      %124 = dma.vmem_to_hbm [thread:$0]  %s119, 256, %s3, [#allocation4], 128, 128, 8
    $region25: #{attention_forward.5} parent=1 // pred_fallthru
      _
    // Predicated region
    $region26: #{attention_forward.5} parent=1 // pred_check
      _
    $region27: #{attention_forward.5} parent=1 // pred_check_branch
      %126 = sbr.rel (0) target = $region29
    $region28: #{attention_forward.5} parent=1 // pred_region
      %127 = dma.done [#allocation4], 256
    $region29: #{attention_forward.5} parent=1 // pred_fallthru
      _
    %128 = vsyncpa [#allocation4], 1

// kernel: attention_forward.4
$region0: #{attention_forward.4}
  #allocation0 [shape = 'u32[]', space=smem, size = 0x4, offset = 0x4, fixed_abs, tag = 'smem constant byte address 0x4 - core index']
  #allocation1 [shape = 'u32[144,128]{1,0:T(1,128)}', space=vmem, size = 0x12000, scoped, tag = 'internal scratch']
  #allocation2 [shape = 'f32[4,8,1]{2,1,0:T(8,128)}', space=vmem, size = 0x4000, scoped, tag = 'scratch operand']
  #allocation3 [shape = 'f32[4,8,1]{2,1,0:T(8,128)}', space=vmem, size = 0x4000, scoped, tag = 'scratch operand']
  #allocation4 [shape = 'f32[4,8,8]{2,1,0:T(8,128)}', space=vmem, size = 0x4000, scoped, tag = 'scratch operand']
  %s0 = inlined_call_operand.vmem [shape: bf16[3,16,32], index: 0, kind: input, shape index: {}, may-alias: {0,1,2}]
  %s1 = inlined_call_operand.vmem [shape: bf16[3,16,32], index: 1, kind: input, shape index: {}, may-alias: {0,1,2}]
  %s2 = inlined_call_operand.vmem [shape: bf16[3,16,32], index: 2, kind: input, shape index: {}, may-alias: {0,1,2}]
  %s3 = inlined_call_operand.vmem [shape: bf16[1,16,32], index: 3, kind: output, shape index: {}]
  %s4 = sld [smem:[#allocation0]]
  $region53: #{attention_forward.4} parent=0
    _
  %s6 = ssub.s32 1, %s4
  %s7 = scalar_select 0, %s6, %s4
  loop: start=0, step=1, limit=4
  $region2: #{attention_forward.4} parent=0 // loop_pre_header
    _
  $region3: #{attention_forward.4} parent=0 // loop_header
    %s9 = sphi 0, %s13
    %p10 = scmp.ge.s32.totalorder %s9, 4
    %s16 = sphi 0, %s42
    %s17 = sphi 0, %s38
    %s18 = sphi 0, %s34
    %s19 = sphi 0, %s30
    %s20 = sphi 0, %s16
    %s21 = sphi 0, %s17
    %s22 = sphi 0, %s18
    %s23 = sphi 0, %s19
    %s24 = sphi 0, %s20
    %s25 = sphi 0, %s21
    %s26 = sphi 0, %s22
    %s27 = sphi 0, %s23
    %s49 = sphi 0, %s51
    %s52 = sphi 0, %s49
    %s53 = sphi 0, %s52
    %s69 = sphi 0, %s53
    %s81 = sphi 0, %s83
    %s84 = sphi 0, %s81
    %s85 = sphi 0, %s84
    %s101 = sphi 0, %s85
    %s113 = sphi 0, %s115
    %s116 = sphi 0, %s113
    %s117 = sphi 0, %s116
    %s133 = sphi 0, %s117
    %s143 = sphi 0, %s145
    %s146 = sphi 0, %s143
    %s147 = sphi 0, %s146
    %s163 = sphi 0, %s147
  $region4: #{attention_forward.4} parent=0 // loop_header_branch
    %12 = sbr.rel (%p10) target = $region8
  $region5: #{attention_forward.4} parent=0 // loop_body
    %s14 = ssub.s32 %s9, 1
    %s15 = ssub.s32 %s9, 2
    %s28 = sadd.s32 1, %s19
    %p29 = scmp.ge.s32.totalorder %s28, 1
    %s30 = scalar_select %p29, 0, %s28
    %s31 = sadd.s32 1, %s18
    %s32 = scalar_select %p29, %s31, %s18
    %p33 = scmp.ge.s32.totalorder %s32, 1
    %s34 = scalar_select %p33, 0, %s32
    %s35 = sadd.s32 1, %s17
    %s36 = scalar_select %p33, %s35, %s17
    %p37 = scmp.ge.s32.totalorder %s36, 1
    %s38 = scalar_select %p37, 0, %s36
    %s39 = sadd.s32 1, %s16
    %s40 = scalar_select %p37, %s39, %s16
    %p41 = scmp.ge.s32.totalorder %s40, 2
    %s42 = scalar_select %p41, 0, %s40
    %s43 = sadd.s32 %s16, %s18
    %s44 = sadd.s32 %s42, %s34
    %s45 = ssub.s32 %s17, %s38
    %s46 = ssub.s32 %s43, %s44
    %s47 = sor.u32 %s45, %s46
    %p48 = scmp.eq.s32.totalorder %s47, 0
    %s50 = sadd.s32 %s49, 1
    %s51 = scalar_select %p48, %s49, %s50
    %p54 = pneg %p48
    %p55 = scmp.eq.s32.totalorder %s9, 1
    %p56 = por %p54, %p55
    %p57 = scmp.ne.s32.totalorder %s49, %s52
    %p58 = scmp.eq.s32.totalorder %s9, 0
    %p59 = por %p57, %p58
    %p60 = scmp.ne.s32.totalorder %s49, %s52
    %p61 = scmp.eq.s32.totalorder %s14, 1
    %p62 = por %p60, %p61
    %p63 = scmp.ne.s32.totalorder %s52, %s53
    %p64 = scmp.eq.s32.totalorder %s14, 0
    %p65 = por %p63, %p64
    %p66 = scmp.ne.s32.totalorder %s52, %s53
    %p67 = scmp.eq.s32.totalorder %s15, 1
    %p68 = por %p66, %p67
    %p70 = scmp.ne.s32.totalorder %s53, %s69
    %p71 = scmp.eq.s32.totalorder %s15, 0
    %p72 = por %p70, %p71
    %s73 = sadd.s32 %s17, 1
    %s74 = sadd.s32 %s16, %s19
    %s75 = sadd.s32 %s38, 1
    %s76 = sadd.s32 %s42, %s30
    %s77 = ssub.s32 %s73, %s75
    %s78 = ssub.s32 %s74, %s76
    %s79 = sor.u32 %s77, %s78
    %p80 = scmp.eq.s32.totalorder %s79, 0
    %s82 = sadd.s32 %s81, 1
    %s83 = scalar_select %p80, %s81, %s82
    %p86 = pneg %p80
    %p87 = scmp.eq.s32.totalorder %s9, 1
    %p88 = por %p86, %p87
    %p89 = scmp.ne.s32.totalorder %s81, %s84
    %p90 = scmp.eq.s32.totalorder %s9, 0
    %p91 = por %p89, %p90
    %p92 = scmp.ne.s32.totalorder %s81, %s84
    %p93 = scmp.eq.s32.totalorder %s14, 1
    %p94 = por %p92, %p93
    %p95 = scmp.ne.s32.totalorder %s84, %s85
    %p96 = scmp.eq.s32.totalorder %s14, 0
    %p97 = por %p95, %p96
    %p98 = scmp.ne.s32.totalorder %s84, %s85
    %p99 = scmp.eq.s32.totalorder %s15, 1
    %p100 = por %p98, %p99
    %p102 = scmp.ne.s32.totalorder %s85, %s101
    %p103 = scmp.eq.s32.totalorder %s15, 0
    %p104 = por %p102, %p103
    %s105 = sadd.s32 %s17, 2
    %s106 = sadd.s32 %s16, %s19
    %s107 = sadd.s32 %s38, 2
    %s108 = sadd.s32 %s42, %s30
    %s109 = ssub.s32 %s105, %s107
    %s110 = ssub.s32 %s106, %s108
    %s111 = sor.u32 %s109, %s110
    %p112 = scmp.eq.s32.totalorder %s111, 0
    %s114 = sadd.s32 %s113, 1
    %s115 = scalar_select %p112, %s113, %s114
    %p118 = pneg %p112
    %p119 = scmp.eq.s32.totalorder %s9, 1
    %p120 = por %p118, %p119
    %p121 = scmp.ne.s32.totalorder %s113, %s116
    %p122 = scmp.eq.s32.totalorder %s9, 0
    %p123 = por %p121, %p122
    %p124 = scmp.ne.s32.totalorder %s113, %s116
    %p125 = scmp.eq.s32.totalorder %s14, 1
    %p126 = por %p124, %p125
    %p127 = scmp.ne.s32.totalorder %s116, %s117
    %p128 = scmp.eq.s32.totalorder %s14, 0
    %p129 = por %p127, %p128
    %p130 = scmp.ne.s32.totalorder %s116, %s117
    %p131 = scmp.eq.s32.totalorder %s15, 1
    %p132 = por %p130, %p131
    %p134 = scmp.ne.s32.totalorder %s117, %s133
    %p135 = scmp.eq.s32.totalorder %s15, 0
    %p136 = por %p134, %p135
    %s137 = sadd.s32 %s16, %s18
    %s138 = sadd.s32 %s42, %s34
    %s139 = ssub.s32 %s17, %s38
    %s140 = ssub.s32 %s137, %s138
    %s141 = sor.u32 %s139, %s140
    %p142 = scmp.eq.s32.totalorder %s141, 0
    %s144 = sadd.s32 %s143, 1
    %s145 = scalar_select %p142, %s143, %s144
    %p148 = pneg %p142
    %p149 = scmp.eq.s32.totalorder %s9, 1
    %p150 = por %p148, %p149
    %p151 = scmp.ne.s32.totalorder %s143, %s146
    %p152 = scmp.eq.s32.totalorder %s9, 0
    %p153 = por %p151, %p152
    %p154 = scmp.ne.s32.totalorder %s143, %s146
    %p155 = scmp.eq.s32.totalorder %s14, 1
    %p156 = por %p154, %p155
    %p157 = scmp.ne.s32.totalorder %s146, %s147
    %p158 = scmp.eq.s32.totalorder %s14, 0
    %p159 = por %p157, %p158
    %p160 = scmp.ne.s32.totalorder %s146, %s147
    %p161 = scmp.eq.s32.totalorder %s15, 1
    %p162 = por %p160, %p161
    %p164 = scmp.ne.s32.totalorder %s147, %s163
    %p165 = scmp.eq.s32.totalorder %s15, 0
    %p166 = por %p164, %p165
    %p167 = scmp.le.s32.totalorder 1, %s9
    %p168 = scmp.lt.s32.totalorder %s9, 3
    %p169 = pnand %p167, %p168
    %p170 = pneg %p169
    // Predicated region
    $region9: #{attention_forward.4} parent=5 // pred_check
      _
    $region10: #{attention_forward.4} parent=5 // pred_check_branch
      %172 = sbr.rel (%p169) target = $region12
    $region11: #{attention_forward.4} parent=5 // pred_region
      %s173 = ssub.s32 %s9, 1
    $region12: #{attention_forward.4} parent=5 // pred_fallthru
      _
    %p174 = scmp.lt.s32.totalorder %s9, 2
    // Predicated region
    $region13: #{attention_forward.4} parent=5 // pred_check
      %p175 = pneg %p174
    $region14: #{attention_forward.4} parent=5 // pred_check_branch
      %177 = sbr.rel (%p175) target = $region16
    $region15: #{attention_forward.4} parent=5 // pred_region
      // Predicated region
      $region17: #{attention_forward.4} parent=15 // pred_check
        %p178 = pneg %p59
      $region18: #{attention_forward.4} parent=15 // pred_check_branch
        %180 = sbr.rel (%p178) target = $region20
      $region19: #{attention_forward.4} parent=15 // pred_region
        %s181 = sadd.s32 %s16, %s18
        %p182 = scmp.lt.s32.totalorder %s17, 2
        %s183 = scalar_select %p182, %s17, 2
        %p184 = scmp.lt.s32.totalorder %s181, 1
        %s185 = scalar_select %p184, %s181, 1
        %s186 = smul.addr %s183, 2
        %s187 = sadd.s32 %s185, %s186
        %s188 = smul.addr %s187, 4
        %s189 = scalar_lea.vmem %s0, %s188
        %s190 = sadd.s32 %s16, %s18
      $region20: #{attention_forward.4} parent=15 // pred_fallthru
        _
      // Predicated region
      $region21: #{attention_forward.4} parent=15 // pred_check
        %p191 = pneg %p91
      $region22: #{attention_forward.4} parent=15 // pred_check_branch
        %193 = sbr.rel (%p191) target = $region24
      $region23: #{attention_forward.4} parent=15 // pred_region
        %s194 = sadd.s32 %s17, 1
        %s195 = sadd.s32 %s16, %s19
        %p196 = scmp.lt.s32.totalorder %s194, 2
        %s197 = scalar_select %p196, %s194, 2
        %p198 = scmp.lt.s32.totalorder %s195, 1
        %s199 = scalar_select %p198, %s195, 1
        %s200 = smul.addr %s197, 2
        %s201 = sadd.s32 %s199, %s200
        %s202 = smul.addr %s201, 4
        %s203 = scalar_lea.vmem %s1, %s202
        %s204 = sadd.s32 %s17, 1
        %s205 = sadd.s32 %s16, %s19
      $region24: #{attention_forward.4} parent=15 // pred_fallthru
        _
      // Predicated region
      $region25: #{attention_forward.4} parent=15 // pred_check
        %p206 = pneg %p123
      $region26: #{attention_forward.4} parent=15 // pred_check_branch
        %208 = sbr.rel (%p206) target = $region28
      $region27: #{attention_forward.4} parent=15 // pred_region
        %s209 = sadd.s32 %s17, 2
        %s210 = sadd.s32 %s16, %s19
        %p211 = scmp.lt.s32.totalorder %s209, 2
        %s212 = scalar_select %p211, %s209, 2
        %p213 = scmp.lt.s32.totalorder %s210, 1
        %s214 = scalar_select %p213, %s210, 1
        %s215 = smul.addr %s212, 2
        %s216 = sadd.s32 %s214, %s215
        %s217 = smul.addr %s216, 4
        %s218 = scalar_lea.vmem %s2, %s217
        %s219 = sadd.s32 %s17, 2
        %s220 = sadd.s32 %s16, %s19
      $region28: #{attention_forward.4} parent=15 // pred_fallthru
        _
    $region16: #{attention_forward.4} parent=5 // pred_fallthru
      _
    %p221 = scmp.le.s32.totalorder 1, %s9
    %p222 = scmp.lt.s32.totalorder %s9, 3
    %p223 = pnand %p221, %p222
    %p224 = pneg %p223
    // Predicated region
    $region29: #{attention_forward.4} parent=5 // pred_check
      _
    $region30: #{attention_forward.4} parent=5 // pred_check_branch
      %226 = sbr.rel (%p223) target = $region32
    $region31: #{attention_forward.4} parent=5 // pred_region
      %s227 = ssub.s32 %s9, 1
      %s228 = sadd.s32 %s20, %s22
      %p229 = scmp.lt.s32.totalorder %s21, 2
      %s230 = scalar_select %p229, %s21, 2
      %p231 = scmp.lt.s32.totalorder %s228, 1
      %s232 = scalar_select %p231, %s228, 1
      %s233 = smul.addr %s230, 2
      %s234 = sadd.s32 %s232, %s233
      %s235 = smul.addr %s234, 4
      %s236 = scalar_lea.vmem %s0, %s235
      %p237 = pneg %p65
      %p238 = pneg %p62
      %s239 = sadd.s32 %s21, 1
      %s240 = sadd.s32 %s20, %s23
      %p241 = scmp.lt.s32.totalorder %s239, 2
      %s242 = scalar_select %p241, %s239, 2
      %p243 = scmp.lt.s32.totalorder %s240, 1
      %s244 = scalar_select %p243, %s240, 1
      %s245 = smul.addr %s242, 2
      %s246 = sadd.s32 %s244, %s245
      %s247 = smul.addr %s246, 4
      %s248 = scalar_lea.vmem %s1, %s247
      %p249 = pneg %p97
      %p250 = pneg %p94
      %s251 = sadd.s32 %s21, 2
      %s252 = sadd.s32 %s20, %s23
      %p253 = scmp.lt.s32.totalorder %s251, 2
      %s254 = scalar_select %p253, %s251, 2
      %p255 = scmp.lt.s32.totalorder %s252, 1
      %s256 = scalar_select %p255, %s252, 1
      %s257 = smul.addr %s254, 2
      %s258 = sadd.s32 %s256, %s257
      %s259 = smul.addr %s258, 4
      %s260 = scalar_lea.vmem %s2, %s259
      %p261 = pneg %p129
      %p262 = pneg %p126
      %p263 = pneg %p159
      %p264 = pneg %p156
      %s265 = sadd.s32 %s20, %s22
      %p266 = scmp.lt.s32.totalorder %s21, 0
      %s267 = scalar_select %p266, %s21, 0
      %p268 = scmp.lt.s32.totalorder %s265, 1
      %s269 = scalar_select %p268, %s265, 1
      %s270 = smul.addr %s267, 2
      %s271 = sadd.s32 %s269, %s270
      %s272 = smul.addr %s271, 4
      %s273 = scalar_lea.vmem %s3, %s272
      %s274 = sadd.s32 %s20, %s22
      %p275 = scmp.lt.s32.totalorder %s21, 2
      %s276 = scalar_select %p275, %s21, 2
      %p277 = scmp.lt.s32.totalorder %s274, 1
      %s278 = scalar_select %p277, %s274, 1
      %s279 = smul.addr %s276, 2
      %s280 = sadd.s32 %s278, %s279
      %s281 = smul.addr %s280, 4
      %s282 = scalar_lea.vmem %s0, %s281
      %s283 = sadd.s32 %s20, %s22
      %s284 = sadd.s32 %s21, 1
      %s285 = sadd.s32 %s20, %s23
      %p286 = scmp.lt.s32.totalorder %s284, 2
      %s287 = scalar_select %p286, %s284, 2
      %p288 = scmp.lt.s32.totalorder %s285, 1
      %s289 = scalar_select %p288, %s285, 1
      %s290 = smul.addr %s287, 2
      %s291 = sadd.s32 %s289, %s290
      %s292 = smul.addr %s291, 4
      %s293 = scalar_lea.vmem %s1, %s292
      %s294 = sadd.s32 %s21, 1
      %s295 = sadd.s32 %s20, %s23
      %s296 = sadd.s32 %s21, 2
      %s297 = sadd.s32 %s20, %s23
      %p298 = scmp.lt.s32.totalorder %s296, 2
      %s299 = scalar_select %p298, %s296, 2
      %p300 = scmp.lt.s32.totalorder %s297, 1
      %s301 = scalar_select %p300, %s297, 1
      %s302 = smul.addr %s299, 2
      %s303 = sadd.s32 %s301, %s302
      %s304 = smul.addr %s303, 4
      %s305 = scalar_lea.vmem %s2, %s304
      %s306 = sadd.s32 %s21, 2
      %s307 = sadd.s32 %s20, %s23
      %s308 = sadd.s32 %s20, %s22
      %p309 = scmp.lt.s32.totalorder %s21, 0
      %s310 = scalar_select %p309, %s21, 0
      %p311 = scmp.lt.s32.totalorder %s308, 1
      %s312 = scalar_select %p311, %s308, 1
      %s313 = smul.addr %s310, 2
      %s314 = sadd.s32 %s312, %s313
      %s315 = smul.addr %s314, 4
      %s316 = scalar_lea.vmem %s3, %s315
      %s317 = sadd.s32 %s20, %s22
      %p319 = scmp.eq.s32.totalorder %s23, 0
      // Predicated region
      $region33: #{attention_forward.4} parent=31 // pred_check
        %p320 = pneg %p319
      $region34: #{attention_forward.4} parent=31 // pred_check_branch
        %322 = sbr.rel (%p320) target = $region36
      $region35: #{attention_forward.4} parent=31 // pred_region
        %vm323 = vcmask 7168
        %324 = vst.msk [vmem:[#allocation2] sm:$0xff] %vm323, -inf
        %325 = vst.msk [vmem:[#allocation2 + $0x8] sm:$0xff] %vm323, -inf
        %326 = vst.msk [vmem:[#allocation2 + $0x10] sm:$0xff] %vm323, -inf
        %327 = vst.msk [vmem:[#allocation2 + $0x18] sm:$0xff] %vm323, -inf
        %328 = vst.msk [vmem:[#allocation3] sm:$0xff] %vm323, 0.0
        %329 = vst.msk [vmem:[#allocation3 + $0x8] sm:$0xff] %vm323, 0.0
        %330 = vst.msk [vmem:[#allocation3 + $0x10] sm:$0xff] %vm323, 0.0
        %331 = vst.msk [vmem:[#allocation3 + $0x18] sm:$0xff] %vm323, 0.0
        %vm332 = vcmask 64512
        %333 = vst.msk [vmem:[#allocation4] sm:$0xff] %vm332, 0.0
        %334 = vst.msk [vmem:[#allocation4 + $0x8] sm:$0xff] %vm332, 0.0
        %335 = vst.msk [vmem:[#allocation4 + $0x10] sm:$0xff] %vm332, 0.0
        %336 = vst.msk [vmem:[#allocation4 + $0x18] sm:$0xff] %vm332, 0.0
      $region36: #{attention_forward.4} parent=31 // pred_fallthru
        _
      %v337 = vld [vmem:[%s282] sm:$0xf]
      %v338 = vld [vmem:[%s293] sm:$0xf]
      %v339 = vld [vmem:[%s305] sm:$0xf]
      %vm340 = vcmask 64512
      %v342 = vsel %vm340, %v337, 0
      %v345 = vsel %vm340, %v338, 0
      %347 = vmatprep.subr.bf16.mxu0 0
      %348 = vmatpush1.bf16.xpose.msra.mxu0 %v345
      %349 = vmatprep.subr.bf16.mxu0 0
      %350 = vmatpush1.bf16.xpose.msra.mxu0 0
      %351 = vmatprep.subr.bf16.mxu0 0
      %352 = vmatpush1.bf16.xpose.msra.mxu0 0
      %353 = vmatprep.subr.bf16.mxu0 0
      %354 = vmatpush1.bf16.xpose.msra.mxu0 0
      %355 = vmatprep.subr.bf16.mxu0 0
      %356 = vmatpush1.bf16.xpose.msra.mxu0 0
      %357 = vmatprep.subr.bf16.mxu0 0
      %358 = vmatpush1.bf16.xpose.msra.mxu0 0
      %359 = vmatprep.subr.bf16.mxu0 0
      %360 = vmatpush1.bf16.xpose.msra.mxu0 0
      %361 = vmatprep.subr.bf16.mxu0 0
      %362 = vmatpush1.bf16.xpose.msra.mxu0 0
      %363 = vmatprep.subr.bf16.mxu0 0
      %364 = vmatpush1.bf16.xpose.msra.mxu0 0
      %365 = vmatprep.subr.bf16.mxu0 0
      %366 = vmatpush1.bf16.xpose.msra.mxu0 0
      %367 = vmatprep.subr.bf16.mxu0 0
      %368 = vmatpush1.bf16.xpose.msra.mxu0 0
      %369 = vmatprep.subr.bf16.mxu0 0
      %370 = vmatpush1.bf16.xpose.msra.mxu0 0
      %371 = vmatprep.subr.bf16.mxu0 0
      %372 = vmatpush1.bf16.xpose.msra.mxu0 0
      %373 = vmatprep.subr.bf16.mxu0 0
      %374 = vmatpush1.bf16.xpose.msra.mxu0 0
      %375 = vmatprep.subr.bf16.mxu0 0
      %376 = vmatpush1.bf16.xpose.msra.mxu0 0
      %377 = vmatprep.subr.bf16.mxu0 0
      %378 = vmatpush1.bf16.xpose.msra.mxu0 0
      %379 = vmatprep.mubr.bf16.mxu0 0
      %380 = vmatmul.mubr.bf16.gmra.mrb[0].mxu0 %v342
      %v381 = vpop.f32.mrb[0].mxu0
      %v382 = vadd.f32 0.0, %v381
      %v383 = vpop.f32.mrb[0].mxu0
      %v384 = vpop.f32.mrb[0].mxu0
      %v385 = vpop.f32.mrb[0].mxu0
      %386 = vdwg.mxu0
      %v387 = vld [vmem:[#allocation2] sm:$0xff]
      %v388 = vsel %vm340, %v382, -inf
      %389 = vmax.xlane.f32.xlu0 %v388
      %v390 = vpop.xlane.xlu0 %389
      %v391 = vmax.f32 %v387, %v390
      %v392 = vsub.f32 %v387, %v391
      %v393 = vmul.f32 %v392, 1.442695
      %v394 = vpow.pop %v393
      %396 = vset.pattern.permute.xlu0 0
      %397 = vperm.xlu0 %396, %v391
      %v398 = vpop.permute.xlu0 %397
      %v400 = vsub.f32 %v382, %v398
      %v401 = vmul.f32 %v400, 1.442695
      %v402 = vpow.pop %v401
      %v403 = vld [vmem:[#allocation3] sm:$0xff]
      %v404 = vmul.f32 %v394, %v403
      %v405 = vsel %vm340, %v402, 0.0
      %406 = vadd.xlane.f32.xlu0 %v405
      %v407 = vpop.xlane.xlu0 %406
      %v408 = vadd.f32 %v404, %v407
      %vm409 = vcmask 7168
      %410 = vst.msk [vmem:[#allocation3] sm:$0xff] %vm409, %v408
      %v411 = vld [vmem:[#allocation4] sm:$0xff]
      %413 = vset.pattern.permute.xlu0 0
      %414 = vperm.xlu0 %413, %v394
      %v415 = vpop.permute.xlu0 %414
      %v417 = vmul.f32 %v415, %v411
      %v418 = vpack.c.bf16 %v402, %v402
      %v420 = vsel %vm340, %v418, 0
      %vm422 = vcmask 1043456
      %v424 = vsel %vm422, %v339, 0
      %426 = vmatprep.subr.bf16.mxu0 0
      %427 = vmatpush1.bf16.msra.mxu0 %v424
      %428 = vmatprep.subr.bf16.mxu0 0
      %429 = vmatpush1.bf16.msra.mxu0 0
      %430 = vmatprep.subr.bf16.mxu0 0
      %431 = vmatpush1.bf16.msra.mxu0 0
      %432 = vmatprep.subr.bf16.mxu0 0
      %433 = vmatpush1.bf16.msra.mxu0 0
      %434 = vmatprep.subr.bf16.mxu0 0
      %435 = vmatpush1.bf16.msra.mxu0 0
      %436 = vmatprep.subr.bf16.mxu0 0
      %437 = vmatpush1.bf16.msra.mxu0 0
      %438 = vmatprep.subr.bf16.mxu0 0
      %439 = vmatpush1.bf16.msra.mxu0 0
      %440 = vmatprep.subr.bf16.mxu0 0
      %441 = vmatpush1.bf16.msra.mxu0 0
      %442 = vmatprep.subr.bf16.mxu0 0
      %443 = vmatpush1.bf16.msra.mxu0 0
      %444 = vmatprep.subr.bf16.mxu0 0
      %445 = vmatpush1.bf16.msra.mxu0 0
      %446 = vmatprep.subr.bf16.mxu0 0
      %447 = vmatpush1.bf16.msra.mxu0 0
      %448 = vmatprep.subr.bf16.mxu0 0
      %449 = vmatpush1.bf16.msra.mxu0 0
      %450 = vmatprep.subr.bf16.mxu0 0
      %451 = vmatpush1.bf16.msra.mxu0 0
      %452 = vmatprep.subr.bf16.mxu0 0
      %453 = vmatpush1.bf16.msra.mxu0 0
      %454 = vmatprep.subr.bf16.mxu0 0
      %455 = vmatpush1.bf16.msra.mxu0 0
      %456 = vmatprep.subr.bf16.mxu0 0
      %457 = vmatpush1.bf16.msra.mxu0 0
      %458 = vmatprep.mubr.bf16.mxu0 0
      %459 = vmatmul.mubr.bf16.gmra.mrb[0].mxu0 %v420
      %v460 = vpop.f32.mrb[0].mxu0
      %v461 = vadd.f32 0.0, %v460
      %v462 = vpop.f32.mrb[0].mxu0
      %v463 = vpop.f32.mrb[0].mxu0
      %v464 = vpop.f32.mrb[0].mxu0
      %465 = vdwg.mxu0
      %v466 = vadd.f32 %v417, %v461
      %467 = vst.msk [vmem:[#allocation4] sm:$0xff] %vm340, %v466
      %468 = vst.msk [vmem:[#allocation2] sm:$0xff] %vm409, %v391
      %v470 = vunpack.c.l.b16 %v337
      %v471 = vpack.c.b16 %v470, %v470
      %472 = vrot.lane.b32.xlu0 %v471, 120
      %v473 = vpop.permute.xlu0 %472
      %v475 = vunpack.c.l.b16 %v338
      %v476 = vpack.c.b16 %v475, %v475
      %477 = vrot.lane.b32.xlu0 %v476, 120
      %v478 = vpop.permute.xlu0 %477
      %v480 = vsel %vm340, %v473, 0
      %v483 = vsel %vm340, %v478, 0
      %485 = vmatprep.subr.bf16.mxu0 0
      %486 = vmatpush1.bf16.xpose.msra.mxu0 %v483
      %487 = vmatprep.subr.bf16.mxu0 0
      %488 = vmatpush1.bf16.xpose.msra.mxu0 0
      %489 = vmatprep.subr.bf16.mxu0 0
      %490 = vmatpush1.bf16.xpose.msra.mxu0 0
      %491 = vmatprep.subr.bf16.mxu0 0
      %492 = vmatpush1.bf16.xpose.msra.mxu0 0
      %493 = vmatprep.subr.bf16.mxu0 0
      %494 = vmatpush1.bf16.xpose.msra.mxu0 0
      %495 = vmatprep.subr.bf16.mxu0 0
      %496 = vmatpush1.bf16.xpose.msra.mxu0 0
      %497 = vmatprep.subr.bf16.mxu0 0
      %498 = vmatpush1.bf16.xpose.msra.mxu0 0
      %499 = vmatprep.subr.bf16.mxu0 0
      %500 = vmatpush1.bf16.xpose.msra.mxu0 0
      %501 = vmatprep.subr.bf16.mxu0 0
      %502 = vmatpush1.bf16.xpose.msra.mxu0 0
      %503 = vmatprep.subr.bf16.mxu0 0
      %504 = vmatpush1.bf16.xpose.msra.mxu0 0
      %505 = vmatprep.subr.bf16.mxu0 0
      %506 = vmatpush1.bf16.xpose.msra.mxu0 0
      %507 = vmatprep.subr.bf16.mxu0 0
      %508 = vmatpush1.bf16.xpose.msra.mxu0 0
      %509 = vmatprep.subr.bf16.mxu0 0
      %510 = vmatpush1.bf16.xpose.msra.mxu0 0
      %511 = vmatprep.subr.bf16.mxu0 0
      %512 = vmatpush1.bf16.xpose.msra.mxu0 0
      %513 = vmatprep.subr.bf16.mxu0 0
      %514 = vmatpush1.bf16.xpose.msra.mxu0 0
      %515 = vmatprep.subr.bf16.mxu0 0
      %516 = vmatpush1.bf16.xpose.msra.mxu0 0
      %517 = vmatprep.mubr.bf16.mxu0 0
      %518 = vmatmul.mubr.bf16.gmra.mrb[0].mxu0 %v480
      %v519 = vpop.f32.mrb[0].mxu0
      %v520 = vadd.f32 0.0, %v519
      %v521 = vpop.f32.mrb[0].mxu0
      %v522 = vpop.f32.mrb[0].mxu0
      %v523 = vpop.f32.mrb[0].mxu0
      %524 = vdwg.mxu0
      %s525 = scalar_lea.vmem [#allocation2], 8
      %v526 = vld [vmem:[%s525] sm:$0xff]
      %v527 = vsel %vm340, %v520, -inf
      %528 = vmax.xlane.f32.xlu0 %v527
      %v529 = vpop.xlane.xlu0 %528
      %v530 = vmax.f32 %v526, %v529
      %v531 = vsub.f32 %v526, %v530
      %v532 = vmul.f32 %v531, 1.442695
      %v533 = vpow.pop %v532
      %535 = vset.pattern.permute.xlu0 0
      %536 = vperm.xlu0 %535, %v530
      %v537 = vpop.permute.xlu0 %536
      %v539 = vsub.f32 %v520, %v537
      %v540 = vmul.f32 %v539, 1.442695
      %v541 = vpow.pop %v540
      %s542 = scalar_lea.vmem [#allocation3], 8
      %v543 = vld [vmem:[%s542] sm:$0xff]
      %v544 = vmul.f32 %v533, %v543
      %v545 = vsel %vm340, %v541, 0.0
      %546 = vadd.xlane.f32.xlu0 %v545
      %v547 = vpop.xlane.xlu0 %546
      %v548 = vadd.f32 %v544, %v547
      %549 = vst.msk [vmem:[%s542] sm:$0xff] %vm409, %v548
      %s550 = scalar_lea.vmem [#allocation4], 8
      %v551 = vld [vmem:[%s550] sm:$0xff]
      %553 = vset.pattern.permute.xlu0 0
      %554 = vperm.xlu0 %553, %v533
      %v555 = vpop.permute.xlu0 %554
      %v557 = vmul.f32 %v555, %v551
      %v558 = vpack.c.bf16 %v541, %v541
      %v560 = vunpack.c.l.b16 %v339
      %v561 = vpack.c.b16 %v560, %v560
      %562 = vrot.lane.b32.xlu0 %v561, 120
      %v563 = vpop.permute.xlu0 %562
      %v565 = vsel %vm340, %v558, 0
      %v568 = vsel %vm422, %v563, 0
      %570 = vmatprep.subr.bf16.mxu0 0
      %571 = vmatpush1.bf16.msra.mxu0 %v568
      %572 = vmatprep.subr.bf16.mxu0 0
      %573 = vmatpush1.bf16.msra.mxu0 0
      %574 = vmatprep.subr.bf16.mxu0 0
      %575 = vmatpush1.bf16.msra.mxu0 0
      %576 = vmatprep.subr.bf16.mxu0 0
      %577 = vmatpush1.bf16.msra.mxu0 0
      %578 = vmatprep.subr.bf16.mxu0 0
      %579 = vmatpush1.bf16.msra.mxu0 0
      %580 = vmatprep.subr.bf16.mxu0 0
      %581 = vmatpush1.bf16.msra.mxu0 0
      %582 = vmatprep.subr.bf16.mxu0 0
      %583 = vmatpush1.bf16.msra.mxu0 0
      %584 = vmatprep.subr.bf16.mxu0 0
      %585 = vmatpush1.bf16.msra.mxu0 0
      %586 = vmatprep.subr.bf16.mxu0 0
      %587 = vmatpush1.bf16.msra.mxu0 0
      %588 = vmatprep.subr.bf16.mxu0 0
      %589 = vmatpush1.bf16.msra.mxu0 0
      %590 = vmatprep.subr.bf16.mxu0 0
      %591 = vmatpush1.bf16.msra.mxu0 0
      %592 = vmatprep.subr.bf16.mxu0 0
      %593 = vmatpush1.bf16.msra.mxu0 0
      %594 = vmatprep.subr.bf16.mxu0 0
      %595 = vmatpush1.bf16.msra.mxu0 0
      %596 = vmatprep.subr.bf16.mxu0 0
      %597 = vmatpush1.bf16.msra.mxu0 0
      %598 = vmatprep.subr.bf16.mxu0 0
      %599 = vmatpush1.bf16.msra.mxu0 0
      %600 = vmatprep.subr.bf16.mxu0 0
      %601 = vmatpush1.bf16.msra.mxu0 0
      %602 = vmatprep.mubr.bf16.mxu0 0
      %603 = vmatmul.mubr.bf16.gmra.mrb[0].mxu0 %v565
      %v604 = vpop.f32.mrb[0].mxu0
      %v605 = vadd.f32 0.0, %v604
      %v606 = vpop.f32.mrb[0].mxu0
      %v607 = vpop.f32.mrb[0].mxu0
      %v608 = vpop.f32.mrb[0].mxu0
      %609 = vdwg.mxu0
      %v610 = vadd.f32 %v557, %v605
      %611 = vst.msk [vmem:[%s550] sm:$0xff] %vm340, %v610
      %612 = vst.msk [vmem:[%s525] sm:$0xff] %vm409, %v530
      %613 = vrot.lane.b32.xlu0 %v471, 112
      %v614 = vpop.permute.xlu0 %613
      %615 = vrot.lane.b32.xlu0 %v476, 112
      %v616 = vpop.permute.xlu0 %615
      %v618 = vsel %vm340, %v614, 0
      %v621 = vsel %vm340, %v616, 0
      %623 = vmatprep.subr.bf16.mxu0 0
      %624 = vmatpush1.bf16.xpose.msra.mxu0 %v621
      %625 = vmatprep.subr.bf16.mxu0 0
      %626 = vmatpush1.bf16.xpose.msra.mxu0 0
      %627 = vmatprep.subr.bf16.mxu0 0
      %628 = vmatpush1.bf16.xpose.msra.mxu0 0
      %629 = vmatprep.subr.bf16.mxu0 0
      %630 = vmatpush1.bf16.xpose.msra.mxu0 0
      %631 = vmatprep.subr.bf16.mxu0 0
      %632 = vmatpush1.bf16.xpose.msra.mxu0 0
      %633 = vmatprep.subr.bf16.mxu0 0
      %634 = vmatpush1.bf16.xpose.msra.mxu0 0
      %635 = vmatprep.subr.bf16.mxu0 0
      %636 = vmatpush1.bf16.xpose.msra.mxu0 0
      %637 = vmatprep.subr.bf16.mxu0 0
      %638 = vmatpush1.bf16.xpose.msra.mxu0 0
      %639 = vmatprep.subr.bf16.mxu0 0
      %640 = vmatpush1.bf16.xpose.msra.mxu0 0
      %641 = vmatprep.subr.bf16.mxu0 0
      %642 = vmatpush1.bf16.xpose.msra.mxu0 0
      %643 = vmatprep.subr.bf16.mxu0 0
      %644 = vmatpush1.bf16.xpose.msra.mxu0 0
      %645 = vmatprep.subr.bf16.mxu0 0
      %646 = vmatpush1.bf16.xpose.msra.mxu0 0
      %647 = vmatprep.subr.bf16.mxu0 0
      %648 = vmatpush1.bf16.xpose.msra.mxu0 0
      %649 = vmatprep.subr.bf16.mxu0 0
      %650 = vmatpush1.bf16.xpose.msra.mxu0 0
      %651 = vmatprep.subr.bf16.mxu0 0
      %652 = vmatpush1.bf16.xpose.msra.mxu0 0
      %653 = vmatprep.subr.bf16.mxu0 0
      %654 = vmatpush1.bf16.xpose.msra.mxu0 0
      %655 = vmatprep.mubr.bf16.mxu0 0
      %656 = vmatmul.mubr.bf16.gmra.mrb[0].mxu0 %v618
      %v657 = vpop.f32.mrb[0].mxu0
      %v658 = vadd.f32 0.0, %v657
      %v659 = vpop.f32.mrb[0].mxu0
      %v660 = vpop.f32.mrb[0].mxu0
      %v661 = vpop.f32.mrb[0].mxu0
      %662 = vdwg.mxu0
      %s663 = scalar_lea.vmem [#allocation2], 16
      %v664 = vld [vmem:[%s663] sm:$0xff]
      %v665 = vsel %vm340, %v658, -inf
      %666 = vmax.xlane.f32.xlu0 %v665
      %v667 = vpop.xlane.xlu0 %666
      %v668 = vmax.f32 %v664, %v667
      %v669 = vsub.f32 %v664, %v668
      %v670 = vmul.f32 %v669, 1.442695
      %v671 = vpow.pop %v670
      %673 = vset.pattern.permute.xlu0 0
      %674 = vperm.xlu0 %673, %v668
      %v675 = vpop.permute.xlu0 %674
      %v677 = vsub.f32 %v658, %v675
      %v678 = vmul.f32 %v677, 1.442695
      %v679 = vpow.pop %v678
      %s680 = scalar_lea.vmem [#allocation3], 16
      %v681 = vld [vmem:[%s680] sm:$0xff]
      %v682 = vmul.f32 %v671, %v681
      %v683 = vsel %vm340, %v679, 0.0
      %684 = vadd.xlane.f32.xlu0 %v683
      %v685 = vpop.xlane.xlu0 %684
      %v686 = vadd.f32 %v682, %v685
      %687 = vst.msk [vmem:[%s680] sm:$0xff] %vm409, %v686
      %s688 = scalar_lea.vmem [#allocation4], 16
      %v689 = vld [vmem:[%s688] sm:$0xff]
      %691 = vset.pattern.permute.xlu0 0
      %692 = vperm.xlu0 %691, %v671
      %v693 = vpop.permute.xlu0 %692
      %v695 = vmul.f32 %v693, %v689
      %v696 = vpack.c.bf16 %v679, %v679
      %697 = vrot.lane.b32.xlu0 %v561, 112
      %v698 = vpop.permute.xlu0 %697
      %v700 = vsel %vm340, %v696, 0
      %v703 = vsel %vm422, %v698, 0
      %705 = vmatprep.subr.bf16.mxu0 0
      %706 = vmatpush1.bf16.msra.mxu0 %v703
      %707 = vmatprep.subr.bf16.mxu0 0
      %708 = vmatpush1.bf16.msra.mxu0 0
      %709 = vmatprep.subr.bf16.mxu0 0
      %710 = vmatpush1.bf16.msra.mxu0 0
      %711 = vmatprep.subr.bf16.mxu0 0
      %712 = vmatpush1.bf16.msra.mxu0 0
      %713 = vmatprep.subr.bf16.mxu0 0
      %714 = vmatpush1.bf16.msra.mxu0 0
      %715 = vmatprep.subr.bf16.mxu0 0
      %716 = vmatpush1.bf16.msra.mxu0 0
      %717 = vmatprep.subr.bf16.mxu0 0
      %718 = vmatpush1.bf16.msra.mxu0 0
      %719 = vmatprep.subr.bf16.mxu0 0
      %720 = vmatpush1.bf16.msra.mxu0 0
      %721 = vmatprep.subr.bf16.mxu0 0
      %722 = vmatpush1.bf16.msra.mxu0 0
      %723 = vmatprep.subr.bf16.mxu0 0
      %724 = vmatpush1.bf16.msra.mxu0 0
      %725 = vmatprep.subr.bf16.mxu0 0
      %726 = vmatpush1.bf16.msra.mxu0 0
      %727 = vmatprep.subr.bf16.mxu0 0
      %728 = vmatpush1.bf16.msra.mxu0 0
      %729 = vmatprep.subr.bf16.mxu0 0
      %730 = vmatpush1.bf16.msra.mxu0 0
      %731 = vmatprep.subr.bf16.mxu0 0
      %732 = vmatpush1.bf16.msra.mxu0 0
      %733 = vmatprep.subr.bf16.mxu0 0
      %734 = vmatpush1.bf16.msra.mxu0 0
      %735 = vmatprep.subr.bf16.mxu0 0
      %736 = vmatpush1.bf16.msra.mxu0 0
      %737 = vmatprep.mubr.bf16.mxu0 0
      %738 = vmatmul.mubr.bf16.gmra.mrb[0].mxu0 %v700
      %v739 = vpop.f32.mrb[0].mxu0
      %v740 = vadd.f32 0.0, %v739
      %v741 = vpop.f32.mrb[0].mxu0
      %v742 = vpop.f32.mrb[0].mxu0
      %v743 = vpop.f32.mrb[0].mxu0
      %744 = vdwg.mxu0
      %v745 = vadd.f32 %v695, %v740
      %746 = vst.msk [vmem:[%s688] sm:$0xff] %vm340, %v745
      %747 = vst.msk [vmem:[%s663] sm:$0xff] %vm409, %v668
      %748 = vrot.lane.b32.xlu0 %v471, 104
      %v749 = vpop.permute.xlu0 %748
      %750 = vrot.lane.b32.xlu0 %v476, 104
      %v751 = vpop.permute.xlu0 %750
      %v753 = vsel %vm340, %v749, 0
      %v756 = vsel %vm340, %v751, 0
      %758 = vmatprep.subr.bf16.mxu0 0
      %759 = vmatpush1.bf16.xpose.msra.mxu0 %v756
      %760 = vmatprep.subr.bf16.mxu0 0
      %761 = vmatpush1.bf16.xpose.msra.mxu0 0
      %762 = vmatprep.subr.bf16.mxu0 0
      %763 = vmatpush1.bf16.xpose.msra.mxu0 0
      %764 = vmatprep.subr.bf16.mxu0 0
      %765 = vmatpush1.bf16.xpose.msra.mxu0 0
      %766 = vmatprep.subr.bf16.mxu0 0
      %767 = vmatpush1.bf16.xpose.msra.mxu0 0
      %768 = vmatprep.subr.bf16.mxu0 0
      %769 = vmatpush1.bf16.xpose.msra.mxu0 0
      %770 = vmatprep.subr.bf16.mxu0 0
      %771 = vmatpush1.bf16.xpose.msra.mxu0 0
      %772 = vmatprep.subr.bf16.mxu0 0
      %773 = vmatpush1.bf16.xpose.msra.mxu0 0
      %774 = vmatprep.subr.bf16.mxu0 0
      %775 = vmatpush1.bf16.xpose.msra.mxu0 0
      %776 = vmatprep.subr.bf16.mxu0 0
      %777 = vmatpush1.bf16.xpose.msra.mxu0 0
      %778 = vmatprep.subr.bf16.mxu0 0
      %779 = vmatpush1.bf16.xpose.msra.mxu0 0
      %780 = vmatprep.subr.bf16.mxu0 0
      %781 = vmatpush1.bf16.xpose.msra.mxu0 0
      %782 = vmatprep.subr.bf16.mxu0 0
      %783 = vmatpush1.bf16.xpose.msra.mxu0 0
      %784 = vmatprep.subr.bf16.mxu0 0
      %785 = vmatpush1.bf16.xpose.msra.mxu0 0
      %786 = vmatprep.subr.bf16.mxu0 0
      %787 = vmatpush1.bf16.xpose.msra.mxu0 0
      %788 = vmatprep.subr.bf16.mxu0 0
      %789 = vmatpush1.bf16.xpose.msra.mxu0 0
      %790 = vmatprep.mubr.bf16.mxu0 0
      %791 = vmatmul.mubr.bf16.gmra.mrb[0].mxu0 %v753
      %v792 = vpop.f32.mrb[0].mxu0
      %v793 = vadd.f32 0.0, %v792
      %v794 = vpop.f32.mrb[0].mxu0
      %v795 = vpop.f32.mrb[0].mxu0
      %v796 = vpop.f32.mrb[0].mxu0
      %797 = vdwg.mxu0
      %s798 = scalar_lea.vmem [#allocation2], 24
      %v799 = vld [vmem:[%s798] sm:$0xff]
      %v800 = vsel %vm340, %v793, -inf
      %801 = vmax.xlane.f32.xlu0 %v800
      %v802 = vpop.xlane.xlu0 %801
      %v803 = vmax.f32 %v799, %v802
      %v804 = vsub.f32 %v799, %v803
      %v805 = vmul.f32 %v804, 1.442695
      %v806 = vpow.pop %v805
      %808 = vset.pattern.permute.xlu0 0
      %809 = vperm.xlu0 %808, %v803
      %v810 = vpop.permute.xlu0 %809
      %v812 = vsub.f32 %v793, %v810
      %v813 = vmul.f32 %v812, 1.442695
      %v814 = vpow.pop %v813
      %s815 = scalar_lea.vmem [#allocation3], 24
      %v816 = vld [vmem:[%s815] sm:$0xff]
      %v817 = vmul.f32 %v806, %v816
      %v818 = vsel %vm340, %v814, 0.0
      %819 = vadd.xlane.f32.xlu0 %v818
      %v820 = vpop.xlane.xlu0 %819
      %v821 = vadd.f32 %v817, %v820
      %822 = vst.msk [vmem:[%s815] sm:$0xff] %vm409, %v821
      %s823 = scalar_lea.vmem [#allocation4], 24
      %v824 = vld [vmem:[%s823] sm:$0xff]
      %826 = vset.pattern.permute.xlu0 0
      %827 = vperm.xlu0 %826, %v806
      %v828 = vpop.permute.xlu0 %827
      %v830 = vmul.f32 %v828, %v824
      %v831 = vpack.c.bf16 %v814, %v814
      %832 = vrot.lane.b32.xlu0 %v561, 104
      %v833 = vpop.permute.xlu0 %832
      %v835 = vsel %vm340, %v831, 0
      %v838 = vsel %vm422, %v833, 0
      %840 = vmatprep.subr.bf16.mxu0 0
      %841 = vmatpush1.bf16.msra.mxu0 %v838
      %842 = vmatprep.subr.bf16.mxu0 0
      %843 = vmatpush1.bf16.msra.mxu0 0
      %844 = vmatprep.subr.bf16.mxu0 0
      %845 = vmatpush1.bf16.msra.mxu0 0
      %846 = vmatprep.subr.bf16.mxu0 0
      %847 = vmatpush1.bf16.msra.mxu0 0
      %848 = vmatprep.subr.bf16.mxu0 0
      %849 = vmatpush1.bf16.msra.mxu0 0
      %850 = vmatprep.subr.bf16.mxu0 0
      %851 = vmatpush1.bf16.msra.mxu0 0
      %852 = vmatprep.subr.bf16.mxu0 0
      %853 = vmatpush1.bf16.msra.mxu0 0
      %854 = vmatprep.subr.bf16.mxu0 0
      %855 = vmatpush1.bf16.msra.mxu0 0
      %856 = vmatprep.subr.bf16.mxu0 0
      %857 = vmatpush1.bf16.msra.mxu0 0
      %858 = vmatprep.subr.bf16.mxu0 0
      %859 = vmatpush1.bf16.msra.mxu0 0
      %860 = vmatprep.subr.bf16.mxu0 0
      %861 = vmatpush1.bf16.msra.mxu0 0
      %862 = vmatprep.subr.bf16.mxu0 0
      %863 = vmatpush1.bf16.msra.mxu0 0
      %864 = vmatprep.subr.bf16.mxu0 0
      %865 = vmatpush1.bf16.msra.mxu0 0
      %866 = vmatprep.subr.bf16.mxu0 0
      %867 = vmatpush1.bf16.msra.mxu0 0
      %868 = vmatprep.subr.bf16.mxu0 0
      %869 = vmatpush1.bf16.msra.mxu0 0
      %870 = vmatprep.subr.bf16.mxu0 0
      %871 = vmatpush1.bf16.msra.mxu0 0
      %872 = vmatprep.mubr.bf16.mxu0 0
      %873 = vmatmul.mubr.bf16.gmra.mrb[0].mxu0 %v835
      %v874 = vpop.f32.mrb[0].mxu0
      %v875 = vadd.f32 0.0, %v874
      %v876 = vpop.f32.mrb[0].mxu0
      %v877 = vpop.f32.mrb[0].mxu0
      %v878 = vpop.f32.mrb[0].mxu0
      %879 = vdwg.mxu0
      %v880 = vadd.f32 %v830, %v875
      %881 = vst.msk [vmem:[%s823] sm:$0xff] %vm340, %v880
      %882 = vst.msk [vmem:[%s798] sm:$0xff] %vm409, %v803
      // Predicated region
      $region37: #{attention_forward.4} parent=31 // pred_check
        %p883 = pneg %p319
      $region38: #{attention_forward.4} parent=31 // pred_check_branch
        %885 = sbr.rel (%p883) target = $region40
      $region39: #{attention_forward.4} parent=31 // pred_region
        %v886 = vld [vmem:[#allocation3] sm:$0xff]
        %v887 = vrcp.pop %v886
        %v888 = vmul.f32 1.0, %v887
        %v889 = vld [vmem:[#allocation4] sm:$0xff]
        %891 = vset.pattern.permute.xlu0 0
        %892 = vperm.xlu0 %891, %v888
        %v893 = vpop.permute.xlu0 %892
        %v895 = vmul.f32 %v889, %v893
        %v896 = vpack.c.bf16 %v895, %v895
        %vm897 = vcmask 60416
        %898 = vst.msk [vmem:[%s316] sm:$0xf] %vm897, %v896
        %v899 = vld [vmem:[%s542] sm:$0xff]
        %v900 = vrcp.pop %v899
        %v901 = vmul.f32 1.0, %v900
        %v902 = vld [vmem:[%s550] sm:$0xff]
        %904 = vset.pattern.permute.xlu0 0
        %905 = vperm.xlu0 %904, %v901
        %v906 = vpop.permute.xlu0 %905
        %v908 = vmul.f32 %v902, %v906
        %v909 = vpack.c.bf16 %v908, %v908
        %v911 = vunpack.c.l.b16 %v909
        %v912 = vpack.c.b16 %v911, %v911
        %913 = vrot.lane.b32.xlu0 %v912, 8
        %v914 = vpop.permute.xlu0 %913
        %vm916 = vcmask 126016
        %917 = vst.msk [vmem:[%s316] sm:$0xf] %vm916, %v914
        %v918 = vld [vmem:[%s680] sm:$0xff]
        %v919 = vrcp.pop %v918
        %v920 = vmul.f32 1.0, %v919
        %v921 = vld [vmem:[%s688] sm:$0xff]
        %923 = vset.pattern.permute.xlu0 0
        %924 = vperm.xlu0 %923, %v920
        %v925 = vpop.permute.xlu0 %924
        %v927 = vmul.f32 %v921, %v925
        %v928 = vpack.c.bf16 %v927, %v927
        %v930 = vunpack.c.l.b16 %v928
        %v931 = vpack.c.b16 %v930, %v930
        %932 = vrot.lane.b32.xlu0 %v931, 16
        %v933 = vpop.permute.xlu0 %932
        %vm935 = vcmask 191616
        %936 = vst.msk [vmem:[%s316] sm:$0xf] %vm935, %v933
        %v937 = vld [vmem:[%s815] sm:$0xff]
        %v938 = vrcp.pop %v937
        %v939 = vmul.f32 1.0, %v938
        %v940 = vld [vmem:[%s823] sm:$0xff]
        %942 = vset.pattern.permute.xlu0 0
        %943 = vperm.xlu0 %942, %v939
        %v944 = vpop.permute.xlu0 %943
        %v946 = vmul.f32 %v940, %v944
        %v947 = vpack.c.bf16 %v946, %v946
        %v949 = vunpack.c.l.b16 %v947
        %v950 = vpack.c.b16 %v949, %v949
        %951 = vrot.lane.b32.xlu0 %v950, 24
        %v952 = vpop.permute.xlu0 %951
        %vm954 = vcmask 257216
        %955 = vst.msk [vmem:[%s316] sm:$0xf] %vm954, %v952
      $region40: #{attention_forward.4} parent=31 // pred_fallthru
        _
      %s956 = sadd.s32 %s20, %s22
      %p957 = scmp.lt.s32.totalorder %s21, 0
      %s958 = scalar_select %p957, %s21, 0
      %p959 = scmp.lt.s32.totalorder %s956, 1
      %s960 = scalar_select %p959, %s956, 1
      %s961 = smul.addr %s958, 2
      %s962 = sadd.s32 %s960, %s961
      %s963 = smul.addr %s962, 4
      %s964 = scalar_lea.vmem %s3, %s963
      // Predicated region
      $region41: #{attention_forward.4} parent=31 // pred_check
        %p965 = pneg %p156
      $region42: #{attention_forward.4} parent=31 // pred_check_branch
        %967 = sbr.rel (%p965) target = $region44
      $region43: #{attention_forward.4} parent=31 // pred_region
        %s968 = sadd.s32 %s20, %s22
      $region44: #{attention_forward.4} parent=31 // pred_fallthru
        _
    $region32: #{attention_forward.4} parent=5 // pred_fallthru
      _
    %p969 = scmp.le.s32.totalorder 2, %s9
    // Predicated region
    $region45: #{attention_forward.4} parent=5 // pred_check
      %p970 = pneg %p969
    $region46: #{attention_forward.4} parent=5 // pred_check_branch
      %972 = sbr.rel (%p970) target = $region48
    $region47: #{attention_forward.4} parent=5 // pred_region
      %s973 = ssub.s32 %s9, 2
      // Predicated region
      $region49: #{attention_forward.4} parent=47 // pred_check
        %p974 = pneg %p162
      $region50: #{attention_forward.4} parent=47 // pred_check_branch
        %976 = sbr.rel (%p974) target = $region52
      $region51: #{attention_forward.4} parent=47 // pred_region
        %s977 = sadd.s32 %s24, %s26
        %p978 = scmp.lt.s32.totalorder %s25, 0
        %s979 = scalar_select %p978, %s25, 0
        %p980 = scmp.lt.s32.totalorder %s977, 1
        %s981 = scalar_select %p980, %s977, 1
        %s982 = smul.addr %s979, 2
        %s983 = sadd.s32 %s981, %s982
        %s984 = smul.addr %s983, 4
        %s985 = scalar_lea.vmem %s3, %s984
      $region52: #{attention_forward.4} parent=47 // pred_fallthru
        _
    $region48: #{attention_forward.4} parent=5 // pred_fallthru
      _
  $region6: #{attention_forward.4} parent=0 // loop_footer
    %s13 = sadd.s32 1, %s9
  $region7: #{attention_forward.4} parent=0 // loop_footer_branch
    %8 = sbr.rel target = $region3
  $region8: #{attention_forward.4} parent=0 // loop_exit
    _

</llo_original>
